<compile_context>
chip_gen: v7x
topology: tpu7x:2x2x1
jax: 0.10.0
libtpu: 0.0.40
codegen_flags: <defaults>
</compile_context>

<pallas_src>
import jax
import jax.numpy as jnp
from jax import lax
from jax.experimental import pallas as pl
from jax.experimental.pallas import tpu as pltpu


def make_gf_kernel(Np, C, K, c1, num_later, tile_n, compute_dtype,
                   use_mxu_dist, channel_major_out, unroll_k):
    """Builds the per-(batch, query-tile) kernel.

    Kernel refs (in order):
      xq   (1, tile_n, C)  query / center points of this tile (f32)
      xft  (1, C, Np)      full (padded) point set, channel-major (f32)
      sqf  (1, 1, Np)      |x_f|^2 (used only on the MXU-distance path)
      key  (1, Np, c1)     x_f @ W1a, bf16 (precomputed in wrapper)
      w1d  (C, c1)         W1b - W1a, bf16
      b1   (1, c1)         folded conv+BN shift of layer 1 (f32)
      [w_l (C_l, C_{l+1}) bf16, b_l (1, C_{l+1}) f32]  for layers 2..L
      o    (1, c_out, tile_n) or (1, tile_n, c_out)    output tile
      h1   (K*tile_n, c1)  VMEM scratch slab of layer-1 activations (bf16)
    """

    def kernel(*refs):
        xq_ref, xft_ref, sqf_ref, key_ref, w1d_ref, b1_ref = refs[:6]
        rest = refs[6:]
        later = rest[:2 * num_later]
        o_ref = rest[2 * num_later]
        h1_ref = rest[2 * num_later + 1]

        x_q = xq_ref[0]                                     # (tile_n, C) f32
        x_ft = xft_ref[0]                                   # (C, Np)     f32

        # ---- pairwise squared distances in feature space (F-KNN), f32 ----
        if use_mxu_dist:
            # larger C: MXU cross term; HIGHEST keeps KNN ordering exact f32.
            sq_q = jnp.sum(x_q * x_q, axis=1, keepdims=True)
            cross = lax.dot_general(
                x_q, x_ft, (((1,), (0,)), ((), ())),
                precision=lax.Precision.HIGHEST,
                preferred_element_type=jnp.float32)
            dist = sq_q + sqf_ref[0] - 2.0 * cross          # (tile_n, Np)
        else:
            # tiny C: exact f32 on the VPU (C passes), frees the MXU for the
            # gather matmuls and sidesteps matmul-precision questions.
            dist = None
            for c in range(C):
                d = x_q[:, c:c + 1] - x_ft[c:c + 1, :]      # (tile_n, Np)
                dist = d * d if dist is None else dist + d * d

        col_iota = lax.broadcasted_iota(jnp.int32, (tile_n, Np), 1)

        # ---- layer-1 constants (loop-invariant), gather-fused formulation ----
        w1d = w1d_ref[...]                                  # (C, c1) bf16
        b1 = b1_ref[...]                                    # (1, c1) f32
        key_tab = key_ref[0]                                # (Np, c1) bf16
        const = jnp.dot(x_q.astype(compute_dtype), w1d,
                        preferred_element_type=jnp.float32) + b1   # (tile_n, c1)

        def select_body(k, dist_k):
            # k-th nearest neighbour (ascending distance, self included),
            # lowest-column-index tie-break (matches stable top_k).
            min_d = jnp.min(dist_k, axis=1, keepdims=True)              # (tile_n, 1)
            cand = jnp.where(dist_k <= min_d, col_iota, Np)             # (tile_n, Np)
            idx = jnp.min(cand, axis=1, keepdims=True)                  # (tile_n, 1)
            onehot = cand == idx            # derived from cand: saves a full pass

            # h1 = relu(onehot @ (x_f @ W1a) + const): gather fused with layer 1.
            gathered = jnp.dot(onehot.astype(compute_dtype), key_tab,
                               preferred_element_type=jnp.float32)      # (tile_n, c1)
            h1 = jnp.maximum(gathered + const, 0.0)

            row0 = k * tile_n
            if not isinstance(row0, int):
                row0 = pl.multiple_of(row0, tile_n)
            h1_ref[pl.ds(row0, tile_n), :] = h1.astype(compute_dtype)

            return jnp.where(onehot, jnp.inf, dist_k)                   # mask selected

        if unroll_k:
            dist_k = dist
            for k in range(K):
                dist_k = select_body(k, dist_k)
        else:
            lax.fori_loop(0, K, select_body, dist, unroll=4)

        # ---- remaining MLP layers: one matmul per layer over all K*tile_n rows ----
        h = h1_ref[...]                                     # (K*tile_n, c1) bf16
        for l in range(num_later):
            w = later[2 * l][...]                           # bf16 (pre-cast in wrapper)
            b = later[2 * l + 1][...]                       # f32
            h = jnp.maximum(jnp.dot(h, w, preferred_element_type=jnp.float32) + b, 0.0)
            if l + 1 < num_later:
                h = h.astype(compute_dtype)                 # single cast per layer

        # ---- max-pool over K: static slices along the major axis (no reshape) ----
        pooled = h[0:tile_n, :]
        for k in range(1, K):
            pooled = jnp.maximum(pooled, h[k * tile_n:(k + 1) * tile_n, :])

        if channel_major_out:
            o_ref[0] = jnp.transpose(pooled).astype(o_ref.dtype)        # (c_out, tile_n)
        else:
            o_ref[0] = pooled.astype(o_ref.dtype)                       # (tile_n, c_out)

    return kernel


def dgcnn_gf_forward(points, weights, shifts, K, *, tile_n=None,
                     compute_dtype=jnp.bfloat16, vpu_dist_max_c=16):
    """points: (B, N, C) f32; weights[l]: (C_in_l, C_out_l); shifts[l]: (1, C_out_l).

    Returns (B, N, C_out) f32 (the module's per-graph-feature-module output).
    """
    B, N, C = points.shape
    assert K <= N, f"K={K} must be <= N={N} (KNN includes self)"
    layer_dims = [weights[0].shape[0]] + [w.shape[1] for w in weights]
    assert layer_dims[0] == 2 * C, "first MLP layer must consume 2*C channels"
    c1, c_out = layer_dims[1], layer_dims[-1]
    num_later = len(weights) - 1

    # ---- query-row tiling + padding of N (never fall back to tile_n = N big) ----
    cap = 128 if N >= 4096 else 256       # smaller tiles at large N (v7x: 64 MiB VMEM)
    if tile_n is None:
        if N <= cap:
            tile_n = N
        else:
            tile_n = cap
            for t in range(cap, 127, -128):   # prefer a multiple-of-128 divisor of N
                if N % t == 0:
                    tile_n = t
                    break
    Np = ((N + tile_n - 1) // tile_n) * tile_n
    n_tiles = Np // tile_n
    pts = points
    if Np != N:
        # sentinel far-away points: never among the K nearest of any real query
        pts = jnp.pad(points, ((0, 0), (0, Np - N), (0, 0)), constant_values=1e9)

    use_mxu_dist = C > vpu_dist_max_c
    channel_major_out = c_out < 128        # lane-dense store for small c_out
    unroll_k = K <= 32

    # ---- split layer-1 weights for the gather-fused formulation ----
    w1 = weights[0]
    w1a = w1[:C, :]                                    # multiplies (neighbour - center)
    w1d = (w1[C:, :] - w1[:C, :]).astype(compute_dtype)
    b1 = shifts[0]

    # ---- per-batch precompute hoisted out of the grid (done once in XLA) ----
    key_tab = jnp.einsum('bnc,cd->bnd', pts, w1a).astype(compute_dtype)   # (B, Np, c1)
    x_ft = jnp.transpose(pts, (0, 2, 1))                                  # (B, C, Np)
    sq_f = jnp.sum(pts * pts, axis=-1)[:, None, :]                        # (B, 1, Np)

    in_specs = [
        pl.BlockSpec((1, tile_n, C), lambda b, n: (b, n, 0)),   # query/center tile
        pl.BlockSpec((1, C, Np), lambda b, n: (b, 0, 0)),       # full point set (ch-major)
        pl.BlockSpec((1, 1, Np), lambda b, n: (b, 0, 0)),       # |x_f|^2 (MXU path only)
        pl.BlockSpec((1, Np, c1), lambda b, n: (b, 0, 0)),      # x_f @ W1a (bf16)
        pl.BlockSpec(w1d.shape, lambda b, n: (0, 0)),
        pl.BlockSpec(b1.shape, lambda b, n: (0, 0)),
    ]
    args = [pts, x_ft, sq_f, key_tab, w1d, b1]
    for w, s in zip(weights[1:], shifts[1:]):
        in_specs.append(pl.BlockSpec(w.shape, lambda b, n: (0, 0)))
        in_specs.append(pl.BlockSpec(s.shape, lambda b, n: (0, 0)))
        args.extend([w.astype(compute_dtype), s])    # pre-cast weights; biases stay f32

    if channel_major_out:
        out_shape = jax.ShapeDtypeStruct((B, c_out, Np), jnp.float32)
        out_spec = pl.BlockSpec((1, c_out, tile_n), lambda b, n: (b, 0, n))
    else:
        out_shape = jax.ShapeDtypeStruct((B, Np, c_out), jnp.float32)
        out_spec = pl.BlockSpec((1, tile_n, c_out), lambda b, n: (b, n, 0))

    # Explicit VMEM budget with headroom (v7x has only 64 MiB physical VMEM).
    est = (6 * tile_n * Np * 4                                    # selection-loop temps
           + 2 * (C * Np * 4 + Np * c1 * 2 + Np * 4 + tile_n * C * 4)   # buffered inputs
           + K * tile_n * c1 * 2                                  # h1 slab
           + 2 * K * tile_n * max(layer_dims) * 4                 # later-layer activations
           + 2 * c_out * tile_n * 4)                              # output tile
    vmem_limit = int(min(max(32 * 2 ** 20, int(1.4 * est)), 56 * 2 ** 20))

    kernel = make_gf_kernel(Np, C, K, c1, num_later, tile_n, compute_dtype,
                            use_mxu_dist, channel_major_out, unroll_k)

    out = pl.pallas_call(
        kernel,
        out_shape=out_shape,
        grid=(B, n_tiles),
        in_specs=in_specs,
        out_specs=out_spec,
        scratch_shapes=[pltpu.VMEM((K * tile_n, c1), compute_dtype)],
        compiler_params=pltpu.CompilerParams(
            dimension_semantics=("parallel", "parallel"),
            vmem_limit_bytes=vmem_limit),
    )(*args)

    if channel_major_out:
        # Kernel stored channel-major for lane-dense vst; transpose back here.
        out = jnp.transpose(out, (0, 2, 1))
    return out[:, :N, :]


def reference(points, weights, shifts, K):
    """Pure-JAX f32 reference of the module forward pass (for verification)."""
    sq = jnp.sum(points * points, axis=-1)                        # (B, N)
    cross = jnp.einsum('bnc,bmc->bnm', points, points,
                       precision=lax.Precision.HIGHEST)
    dist = sq[:, :, None] + sq[:, None, :] - 2.0 * cross          # (B, N, N)
    _, idx = jax.lax.top_k(-dist, K)                              # (B, N, K)
    neigh = jax.vmap(lambda p, ix: p[ix])(points, idx)            # (B, N, K, C)
    center = jnp.broadcast_to(points[:, :, None, :], neigh.shape)
    h = jnp.concatenate([neigh - center, center], axis=-1)        # (B, N, K, 2C)
    for w, s in zip(weights, shifts):
        h = jnp.maximum(jnp.einsum('bnkc,cd->bnkd', h, w,
                                   precision=lax.Precision.HIGHEST) + s[0], 0.0)
    return jnp.max(h, axis=2)                                     # (B, N, C_out)


def init_params(key, mlp_channels, eps=1e-5):
    """Deterministic Conv2d(1x1)+BN2d(eval) params, folded to (W_eff, shift)."""
    weights, shifts = [], []
    for l in range(len(mlp_channels) - 1):
        c_in, c_out = mlp_channels[l], mlp_channels[l + 1]
        key, k_w, k_b, k_g, k_be = jax.random.split(key, 5)
        w = jax.random.normal(k_w, (c_in, c_out), jnp.float32) * 0.2   # conv weight
        b = jax.random.normal(k_b, (c_out,), jnp.float32) * 0.1        # conv bias
        gamma = 1.0 + 0.1 * jax.random.normal(k_g, (c_out,), jnp.float32)
        beta = 0.1 * jax.random.normal(k_be, (c_out,), jnp.float32)
        running_mean = jnp.zeros((c_out,), jnp.float32)
        running_var = jnp.ones((c_out,), jnp.float32)
        scale = gamma / jnp.sqrt(running_var + eps)
        weights.append(w * scale[None, :])
        shifts.append((beta + (b - running_mean) * scale)[None, :])
    return weights, shifts


if __name__ == "__main__":
    # Module config: radii=[None], sample_nums=[8], mlp_channels=[[8, 32, 16]],
    # knn_modes=['F-KNN'], pool_mode='max' -> input (B, N, C=4), 2C = 8.
    B, N, C, K = 2, 16, 4, 8
    mlp_channels = [2 * C, 32, 16]

    key = jax.random.PRNGKey(0)
    k_pts, k_par = jax.random.split(key)
    points = jax.random.normal(k_pts, (B, N, C), jnp.float32)
    weights, shifts = init_params(k_par, mlp_channels)

    out = dgcnn_gf_forward(points, weights, shifts, K)
    out = jax.block_until_ready(out)

    ref = reference(points, weights, shifts, K)
    assert out.shape == (B, N, mlp_channels[-1]), out.shape
    # Gather / MLP matmuls use bf16 MXU operands (f32 accumulation); the KNN
    # distances themselves are exact f32, matching the HIGHEST-precision ref.
    err = float(jnp.max(jnp.abs(out - ref)))
    assert jnp.allclose(out, ref, rtol=5e-2, atol=5e-2), f"max abs err {err}"

    print("KERNEL_OK")
</pallas_src>

<mosaic_0001>
module attributes {stable_mosaic.version = 11 : i64} {
  func.func @kernel(%arg0: i32, %arg1: i32, %arg2: memref<1x16x4xf32, #tpu.memory_space<vmem>>, %arg3: memref<1x4x16xf32, #tpu.memory_space<vmem>>, %arg4: memref<1x1x16xf32, #tpu.memory_space<vmem>>, %arg5: memref<1x16x32xbf16, #tpu.memory_space<vmem>>, %arg6: memref<4x32xbf16, #tpu.memory_space<vmem>>, %arg7: memref<1x32xf32, #tpu.memory_space<vmem>>, %arg8: memref<32x16xbf16, #tpu.memory_space<vmem>>, %arg9: memref<1x16xf32, #tpu.memory_space<vmem>>, %arg10: memref<1x16x16xf32, #tpu.memory_space<vmem>>, %arg11: memref<128x32xbf16, #tpu.memory_space<vmem>>) attributes {dimension_semantics = [#tpu.dimension_semantics<parallel>, #tpu.dimension_semantics<parallel>], iteration_bounds = array<i64: 2, 1>, scalar_prefetch = 0 : i64, scratch_operands = 1 : i64, tpu.core_type = #tpu.core_type<tc>, window_params = [{transform_indices = @transform_0, window_bounds = array<i64: 1, 16, 4>}, {transform_indices = @transform_1, window_bounds = array<i64: 1, 4, 16>}, {transform_indices = @transform_2, window_bounds = array<i64: 1, 1, 16>}, {transform_indices = @transform_3, window_bounds = array<i64: 1, 16, 32>}, {pipeline_mode = #tpu.pipeline_mode<synchronous>, transform_indices = @transform_4, window_bounds = array<i64: 4, 32>}, {pipeline_mode = #tpu.pipeline_mode<synchronous>, transform_indices = @transform_5, window_bounds = array<i64: 1, 32>}, {pipeline_mode = #tpu.pipeline_mode<synchronous>, transform_indices = @transform_6, window_bounds = array<i64: 32, 16>}, {pipeline_mode = #tpu.pipeline_mode<synchronous>, transform_indices = @transform_7, window_bounds = array<i64: 1, 16>}, {transform_indices = @transform_8, window_bounds = array<i64: 1, 16, 16>}]} {
    %c0 = arith.constant 0 : index
    %c0_0 = arith.constant 0 : index
    %c0_1 = arith.constant 0 : index
    %0 = vector.load %arg2[%c0, %c0_0, %c0_1] : memref<1x16x4xf32, #tpu.memory_space<vmem>>, vector<1x16x4xf32>
    %1 = vector.shape_cast %0 : vector<1x16x4xf32> to vector<16x4xf32>
    %c0_2 = arith.constant 0 : index
    %c0_3 = arith.constant 0 : index
    %c0_4 = arith.constant 0 : index
    %2 = vector.load %arg3[%c0_2, %c0_3, %c0_4] : memref<1x4x16xf32, #tpu.memory_space<vmem>>, vector<1x4x16xf32>
    %3 = vector.shape_cast %2 : vector<1x4x16xf32> to vector<4x16xf32>
    %4 = vector.extract_strided_slice %1 {offsets = [0, 0], sizes = [16, 1], strides = [1, 1]} : vector<16x4xf32> to vector<16x1xf32>
    %5 = vector.extract_strided_slice %3 {offsets = [0, 0], sizes = [1, 16], strides = [1, 1]} : vector<4x16xf32> to vector<1x16xf32>
    %6 = vector.broadcast %4 : vector<16x1xf32> to vector<16x16xf32>
    %7 = vector.broadcast %5 : vector<1x16xf32> to vector<16x16xf32>
    %8 = arith.subf %6, %7 : vector<16x16xf32>
    %9 = arith.mulf %8, %8 : vector<16x16xf32>
    %10 = vector.extract_strided_slice %1 {offsets = [0, 1], sizes = [16, 1], strides = [1, 1]} : vector<16x4xf32> to vector<16x1xf32>
    %11 = vector.extract_strided_slice %3 {offsets = [1, 0], sizes = [1, 16], strides = [1, 1]} : vector<4x16xf32> to vector<1x16xf32>
    %12 = vector.broadcast %10 : vector<16x1xf32> to vector<16x16xf32>
    %13 = vector.broadcast %11 : vector<1x16xf32> to vector<16x16xf32>
    %14 = arith.subf %12, %13 : vector<16x16xf32>
    %15 = arith.mulf %14, %14 : vector<16x16xf32>
    %16 = arith.addf %9, %15 : vector<16x16xf32>
    %17 = vector.extract_strided_slice %1 {offsets = [0, 2], sizes = [16, 1], strides = [1, 1]} : vector<16x4xf32> to vector<16x1xf32>
    %18 = vector.extract_strided_slice %3 {offsets = [2, 0], sizes = [1, 16], strides = [1, 1]} : vector<4x16xf32> to vector<1x16xf32>
    %19 = vector.broadcast %17 : vector<16x1xf32> to vector<16x16xf32>
    %20 = vector.broadcast %18 : vector<1x16xf32> to vector<16x16xf32>
    %21 = arith.subf %19, %20 : vector<16x16xf32>
    %22 = arith.mulf %21, %21 : vector<16x16xf32>
    %23 = arith.addf %16, %22 : vector<16x16xf32>
    %24 = vector.extract_strided_slice %1 {offsets = [0, 3], sizes = [16, 1], strides = [1, 1]} : vector<16x4xf32> to vector<16x1xf32>
    %25 = vector.extract_strided_slice %3 {offsets = [3, 0], sizes = [1, 16], strides = [1, 1]} : vector<4x16xf32> to vector<1x16xf32>
    %26 = vector.broadcast %24 : vector<16x1xf32> to vector<16x16xf32>
    %27 = vector.broadcast %25 : vector<1x16xf32> to vector<16x16xf32>
    %28 = arith.subf %26, %27 : vector<16x16xf32>
    %29 = arith.mulf %28, %28 : vector<16x16xf32>
    %30 = arith.addf %23, %29 : vector<16x16xf32>
    %31 = tpu.iota {dimensions = array<i32: 1>} : vector<16x16xi32>
    %c0_5 = arith.constant 0 : index
    %c0_6 = arith.constant 0 : index
    %32 = vector.load %arg6[%c0_5, %c0_6] : memref<4x32xbf16, #tpu.memory_space<vmem>>, vector<4x32xbf16>
    %c0_7 = arith.constant 0 : index
    %c0_8 = arith.constant 0 : index
    %33 = vector.load %arg7[%c0_7, %c0_8] : memref<1x32xf32, #tpu.memory_space<vmem>>, vector<1x32xf32>
    %c0_9 = arith.constant 0 : index
    %c0_10 = arith.constant 0 : index
    %c0_11 = arith.constant 0 : index
    %34 = vector.load %arg5[%c0_9, %c0_10, %c0_11] : memref<1x16x32xbf16, #tpu.memory_space<vmem>>, vector<1x16x32xbf16>
    %35 = vector.shape_cast %34 : vector<1x16x32xbf16> to vector<16x32xbf16>
    %36 = arith.truncf %1 : vector<16x4xf32> to vector<16x4xbf16>
    %cst = arith.constant dense<0.000000e+00> : vector<16x32xf32>
    %37 = tpu.matmul %36, %32, %cst {dimension_numbers = #tpu.dot_dimension_numbers<[1], [0], [0], [1], [0, 0, 1, 1], [], []>} : vector<16x4xbf16>, vector<4x32xbf16>, vector<16x32xf32> -> vector<16x32xf32>
    %38 = vector.broadcast %33 : vector<1x32xf32> to vector<16x32xf32>
    %39 = arith.addf %37, %38 : vector<16x32xf32>
    %cst_12 = arith.constant dense<0x7F800000> : vector<16xf32>
    %40 = vector.multi_reduction <minimumf>, %30, %cst_12 [1] : vector<16x16xf32> to vector<16xf32>
    %41 = vector.shape_cast %40 : vector<16xf32> to vector<16x1xf32>
    %42 = vector.broadcast %41 : vector<16x1xf32> to vector<16x16xf32>
    %43 = arith.cmpf ole, %30, %42 : vector<16x16xf32>
    %c16_i32 = arith.constant 16 : i32
    %44 = vector.broadcast %c16_i32 : i32 to vector<16x16xi32>
    %45 = arith.select %43, %31, %44 : vector<16x16xi1>, vector<16x16xi32>
    %cst_13 = arith.constant dense<2147483647> : vector<16xi32>
    %46 = vector.multi_reduction <minsi>, %45, %cst_13 [1] : vector<16x16xi32> to vector<16xi32>
    %47 = vector.shape_cast %46 : vector<16xi32> to vector<16x1xi32>
    %48 = vector.broadcast %47 : vector<16x1xi32> to vector<16x16xi32>
    %49 = arith.cmpi eq, %45, %48 : vector<16x16xi32>
    %50 = arith.extui %49 : vector<16x16xi1> to vector<16x16xi32>
    %51 = arith.sitofp %50 : vector<16x16xi32> to vector<16x16xf32>
    %52 = arith.truncf %51 : vector<16x16xf32> to vector<16x16xbf16>
    %cst_14 = arith.constant dense<0.000000e+00> : vector<16x32xf32>
    %53 = tpu.matmul %52, %35, %cst_14 {dimension_numbers = #tpu.dot_dimension_numbers<[1], [0], [0], [1], [0, 0, 1, 1], [], []>} : vector<16x16xbf16>, vector<16x32xbf16>, vector<16x32xf32> -> vector<16x32xf32>
    %54 = arith.addf %53, %39 : vector<16x32xf32>
    %cst_15 = arith.constant 0.000000e+00 : f32
    %55 = vector.broadcast %cst_15 : f32 to vector<16x32xf32>
    %56 = arith.maximumf %54, %55 : vector<16x32xf32>
    %57 = arith.truncf %56 : vector<16x32xf32> to vector<16x32xbf16>
    %c0_16 = arith.constant 0 : index
    %c0_17 = arith.constant 0 : index
    %58 = vector.load %arg11[%c0_16, %c0_17] : memref<128x32xbf16, #tpu.memory_space<vmem>>, vector<16x32xbf16>
    tpu.vector_store %arg11[%c0_16, %c0_17], %57 {strides = array<i32>} : memref<128x32xbf16, #tpu.memory_space<vmem>>, vector<16x32xbf16>,
    %cst_18 = arith.constant 0x7F800000 : f32
    %59 = vector.broadcast %cst_18 : f32 to vector<16x16xf32>
    %60 = arith.select %49, %59, %30 : vector<16x16xi1>, vector<16x16xf32>
    %cst_19 = arith.constant dense<0x7F800000> : vector<16xf32>
    %61 = vector.multi_reduction <minimumf>, %60, %cst_19 [1] : vector<16x16xf32> to vector<16xf32>
    %62 = vector.shape_cast %61 : vector<16xf32> to vector<16x1xf32>
    %63 = vector.broadcast %62 : vector<16x1xf32> to vector<16x16xf32>
    %64 = arith.cmpf ole, %60, %63 : vector<16x16xf32>
    %c16_i32_20 = arith.constant 16 : i32
    %65 = vector.broadcast %c16_i32_20 : i32 to vector<16x16xi32>
    %66 = arith.select %64, %31, %65 : vector<16x16xi1>, vector<16x16xi32>
    %cst_21 = arith.constant dense<2147483647> : vector<16xi32>
    %67 = vector.multi_reduction <minsi>, %66, %cst_21 [1] : vector<16x16xi32> to vector<16xi32>
    %68 = vector.shape_cast %67 : vector<16xi32> to vector<16x1xi32>
    %69 = vector.broadcast %68 : vector<16x1xi32> to vector<16x16xi32>
    %70 = arith.cmpi eq, %66, %69 : vector<16x16xi32>
    %71 = arith.extui %70 : vector<16x16xi1> to vector<16x16xi32>
    %72 = arith.sitofp %71 : vector<16x16xi32> to vector<16x16xf32>
    %73 = arith.truncf %72 : vector<16x16xf32> to vector<16x16xbf16>
    %cst_22 = arith.constant dense<0.000000e+00> : vector<16x32xf32>
    %74 = tpu.matmul %73, %35, %cst_22 {dimension_numbers = #tpu.dot_dimension_numbers<[1], [0], [0], [1], [0, 0, 1, 1], [], []>} : vector<16x16xbf16>, vector<16x32xbf16>, vector<16x32xf32> -> vector<16x32xf32>
    %75 = arith.addf %74, %39 : vector<16x32xf32>
    %cst_23 = arith.constant 0.000000e+00 : f32
    %76 = vector.broadcast %cst_23 : f32 to vector<16x32xf32>
    %77 = arith.maximumf %75, %76 : vector<16x32xf32>
    %78 = arith.truncf %77 : vector<16x32xf32> to vector<16x32xbf16>
    %c16 = arith.constant 16 : index
    %c0_24 = arith.constant 0 : index
    %79 = vector.load %arg11[%c16, %c0_24] : memref<128x32xbf16, #tpu.memory_space<vmem>>, vector<16x32xbf16>
    tpu.vector_store %arg11[%c16, %c0_24], %78 {strides = array<i32>} : memref<128x32xbf16, #tpu.memory_space<vmem>>, vector<16x32xbf16>,
    %cst_25 = arith.constant 0x7F800000 : f32
    %80 = vector.broadcast %cst_25 : f32 to vector<16x16xf32>
    %81 = arith.select %70, %80, %60 : vector<16x16xi1>, vector<16x16xf32>
    %cst_26 = arith.constant dense<0x7F800000> : vector<16xf32>
    %82 = vector.multi_reduction <minimumf>, %81, %cst_26 [1] : vector<16x16xf32> to vector<16xf32>
    %83 = vector.shape_cast %82 : vector<16xf32> to vector<16x1xf32>
    %84 = vector.broadcast %83 : vector<16x1xf32> to vector<16x16xf32>
    %85 = arith.cmpf ole, %81, %84 : vector<16x16xf32>
    %c16_i32_27 = arith.constant 16 : i32
    %86 = vector.broadcast %c16_i32_27 : i32 to vector<16x16xi32>
    %87 = arith.select %85, %31, %86 : vector<16x16xi1>, vector<16x16xi32>
    %cst_28 = arith.constant dense<2147483647> : vector<16xi32>
    %88 = vector.multi_reduction <minsi>, %87, %cst_28 [1] : vector<16x16xi32> to vector<16xi32>
    %89 = vector.shape_cast %88 : vector<16xi32> to vector<16x1xi32>
    %90 = vector.broadcast %89 : vector<16x1xi32> to vector<16x16xi32>
    %91 = arith.cmpi eq, %87, %90 : vector<16x16xi32>
    %92 = arith.extui %91 : vector<16x16xi1> to vector<16x16xi32>
    %93 = arith.sitofp %92 : vector<16x16xi32> to vector<16x16xf32>
    %94 = arith.truncf %93 : vector<16x16xf32> to vector<16x16xbf16>
    %cst_29 = arith.constant dense<0.000000e+00> : vector<16x32xf32>
    %95 = tpu.matmul %94, %35, %cst_29 {dimension_numbers = #tpu.dot_dimension_numbers<[1], [0], [0], [1], [0, 0, 1, 1], [], []>} : vector<16x16xbf16>, vector<16x32xbf16>, vector<16x32xf32> -> vector<16x32xf32>
    %96 = arith.addf %95, %39 : vector<16x32xf32>
    %cst_30 = arith.constant 0.000000e+00 : f32
    %97 = vector.broadcast %cst_30 : f32 to vector<16x32xf32>
    %98 = arith.maximumf %96, %97 : vector<16x32xf32>
    %99 = arith.truncf %98 : vector<16x32xf32> to vector<16x32xbf16>
    %c32 = arith.constant 32 : index
    %c0_31 = arith.constant 0 : index
    %100 = vector.load %arg11[%c32, %c0_31] : memref<128x32xbf16, #tpu.memory_space<vmem>>, vector<16x32xbf16>
    tpu.vector_store %arg11[%c32, %c0_31], %99 {strides = array<i32>} : memref<128x32xbf16, #tpu.memory_space<vmem>>, vector<16x32xbf16>,
    %cst_32 = arith.constant 0x7F800000 : f32
    %101 = vector.broadcast %cst_32 : f32 to vector<16x16xf32>
    %102 = arith.select %91, %101, %81 : vector<16x16xi1>, vector<16x16xf32>
    %cst_33 = arith.constant dense<0x7F800000> : vector<16xf32>
    %103 = vector.multi_reduction <minimumf>, %102, %cst_33 [1] : vector<16x16xf32> to vector<16xf32>
    %104 = vector.shape_cast %103 : vector<16xf32> to vector<16x1xf32>
    %105 = vector.broadcast %104 : vector<16x1xf32> to vector<16x16xf32>
    %106 = arith.cmpf ole, %102, %105 : vector<16x16xf32>
    %c16_i32_34 = arith.constant 16 : i32
    %107 = vector.broadcast %c16_i32_34 : i32 to vector<16x16xi32>
    %108 = arith.select %106, %31, %107 : vector<16x16xi1>, vector<16x16xi32>
    %cst_35 = arith.constant dense<2147483647> : vector<16xi32>
    %109 = vector.multi_reduction <minsi>, %108, %cst_35 [1] : vector<16x16xi32> to vector<16xi32>
    %110 = vector.shape_cast %109 : vector<16xi32> to vector<16x1xi32>
    %111 = vector.broadcast %110 : vector<16x1xi32> to vector<16x16xi32>
    %112 = arith.cmpi eq, %108, %111 : vector<16x16xi32>
    %113 = arith.extui %112 : vector<16x16xi1> to vector<16x16xi32>
    %114 = arith.sitofp %113 : vector<16x16xi32> to vector<16x16xf32>
    %115 = arith.truncf %114 : vector<16x16xf32> to vector<16x16xbf16>
    %cst_36 = arith.constant dense<0.000000e+00> : vector<16x32xf32>
    %116 = tpu.matmul %115, %35, %cst_36 {dimension_numbers = #tpu.dot_dimension_numbers<[1], [0], [0], [1], [0, 0, 1, 1], [], []>} : vector<16x16xbf16>, vector<16x32xbf16>, vector<16x32xf32> -> vector<16x32xf32>
    %117 = arith.addf %116, %39 : vector<16x32xf32>
    %cst_37 = arith.constant 0.000000e+00 : f32
    %118 = vector.broadcast %cst_37 : f32 to vector<16x32xf32>
    %119 = arith.maximumf %117, %118 : vector<16x32xf32>
    %120 = arith.truncf %119 : vector<16x32xf32> to vector<16x32xbf16>
    %c48 = arith.constant 48 : index
    %c0_38 = arith.constant 0 : index
    %121 = vector.load %arg11[%c48, %c0_38] : memref<128x32xbf16, #tpu.memory_space<vmem>>, vector<16x32xbf16>
    tpu.vector_store %arg11[%c48, %c0_38], %120 {strides = array<i32>} : memref<128x32xbf16, #tpu.memory_space<vmem>>, vector<16x32xbf16>,
    %cst_39 = arith.constant 0x7F800000 : f32
    %122 = vector.broadcast %cst_39 : f32 to vector<16x16xf32>
    %123 = arith.select %112, %122, %102 : vector<16x16xi1>, vector<16x16xf32>
    %cst_40 = arith.constant dense<0x7F800000> : vector<16xf32>
    %124 = vector.multi_reduction <minimumf>, %123, %cst_40 [1] : vector<16x16xf32> to vector<16xf32>
    %125 = vector.shape_cast %124 : vector<16xf32> to vector<16x1xf32>
    %126 = vector.broadcast %125 : vector<16x1xf32> to vector<16x16xf32>
    %127 = arith.cmpf ole, %123, %126 : vector<16x16xf32>
    %c16_i32_41 = arith.constant 16 : i32
    %128 = vector.broadcast %c16_i32_41 : i32 to vector<16x16xi32>
    %129 = arith.select %127, %31, %128 : vector<16x16xi1>, vector<16x16xi32>
    %cst_42 = arith.constant dense<2147483647> : vector<16xi32>
    %130 = vector.multi_reduction <minsi>, %129, %cst_42 [1] : vector<16x16xi32> to vector<16xi32>
    %131 = vector.shape_cast %130 : vector<16xi32> to vector<16x1xi32>
    %132 = vector.broadcast %131 : vector<16x1xi32> to vector<16x16xi32>
    %133 = arith.cmpi eq, %129, %132 : vector<16x16xi32>
    %134 = arith.extui %133 : vector<16x16xi1> to vector<16x16xi32>
    %135 = arith.sitofp %134 : vector<16x16xi32> to vector<16x16xf32>
    %136 = arith.truncf %135 : vector<16x16xf32> to vector<16x16xbf16>
    %cst_43 = arith.constant dense<0.000000e+00> : vector<16x32xf32>
    %137 = tpu.matmul %136, %35, %cst_43 {dimension_numbers = #tpu.dot_dimension_numbers<[1], [0], [0], [1], [0, 0, 1, 1], [], []>} : vector<16x16xbf16>, vector<16x32xbf16>, vector<16x32xf32> -> vector<16x32xf32>
    %138 = arith.addf %137, %39 : vector<16x32xf32>
    %cst_44 = arith.constant 0.000000e+00 : f32
    %139 = vector.broadcast %cst_44 : f32 to vector<16x32xf32>
    %140 = arith.maximumf %138, %139 : vector<16x32xf32>
    %141 = arith.truncf %140 : vector<16x32xf32> to vector<16x32xbf16>
    %c64 = arith.constant 64 : index
    %c0_45 = arith.constant 0 : index
    %142 = vector.load %arg11[%c64, %c0_45] : memref<128x32xbf16, #tpu.memory_space<vmem>>, vector<16x32xbf16>
    tpu.vector_store %arg11[%c64, %c0_45], %141 {strides = array<i32>} : memref<128x32xbf16, #tpu.memory_space<vmem>>, vector<16x32xbf16>,
    %cst_46 = arith.constant 0x7F800000 : f32
    %143 = vector.broadcast %cst_46 : f32 to vector<16x16xf32>
    %144 = arith.select %133, %143, %123 : vector<16x16xi1>, vector<16x16xf32>
    %cst_47 = arith.constant dense<0x7F800000> : vector<16xf32>
    %145 = vector.multi_reduction <minimumf>, %144, %cst_47 [1] : vector<16x16xf32> to vector<16xf32>
    %146 = vector.shape_cast %145 : vector<16xf32> to vector<16x1xf32>
    %147 = vector.broadcast %146 : vector<16x1xf32> to vector<16x16xf32>
    %148 = arith.cmpf ole, %144, %147 : vector<16x16xf32>
    %c16_i32_48 = arith.constant 16 : i32
    %149 = vector.broadcast %c16_i32_48 : i32 to vector<16x16xi32>
    %150 = arith.select %148, %31, %149 : vector<16x16xi1>, vector<16x16xi32>
    %cst_49 = arith.constant dense<2147483647> : vector<16xi32>
    %151 = vector.multi_reduction <minsi>, %150, %cst_49 [1] : vector<16x16xi32> to vector<16xi32>
    %152 = vector.shape_cast %151 : vector<16xi32> to vector<16x1xi32>
    %153 = vector.broadcast %152 : vector<16x1xi32> to vector<16x16xi32>
    %154 = arith.cmpi eq, %150, %153 : vector<16x16xi32>
    %155 = arith.extui %154 : vector<16x16xi1> to vector<16x16xi32>
    %156 = arith.sitofp %155 : vector<16x16xi32> to vector<16x16xf32>
    %157 = arith.truncf %156 : vector<16x16xf32> to vector<16x16xbf16>
    %cst_50 = arith.constant dense<0.000000e+00> : vector<16x32xf32>
    %158 = tpu.matmul %157, %35, %cst_50 {dimension_numbers = #tpu.dot_dimension_numbers<[1], [0], [0], [1], [0, 0, 1, 1], [], []>} : vector<16x16xbf16>, vector<16x32xbf16>, vector<16x32xf32> -> vector<16x32xf32>
    %159 = arith.addf %158, %39 : vector<16x32xf32>
    %cst_51 = arith.constant 0.000000e+00 : f32
    %160 = vector.broadcast %cst_51 : f32 to vector<16x32xf32>
    %161 = arith.maximumf %159, %160 : vector<16x32xf32>
    %162 = arith.truncf %161 : vector<16x32xf32> to vector<16x32xbf16>
    %c80 = arith.constant 80 : index
    %c0_52 = arith.constant 0 : index
    %163 = vector.load %arg11[%c80, %c0_52] : memref<128x32xbf16, #tpu.memory_space<vmem>>, vector<16x32xbf16>
    tpu.vector_store %arg11[%c80, %c0_52], %162 {strides = array<i32>} : memref<128x32xbf16, #tpu.memory_space<vmem>>, vector<16x32xbf16>,
    %cst_53 = arith.constant 0x7F800000 : f32
    %164 = vector.broadcast %cst_53 : f32 to vector<16x16xf32>
    %165 = arith.select %154, %164, %144 : vector<16x16xi1>, vector<16x16xf32>
    %cst_54 = arith.constant dense<0x7F800000> : vector<16xf32>
    %166 = vector.multi_reduction <minimumf>, %165, %cst_54 [1] : vector<16x16xf32> to vector<16xf32>
    %167 = vector.shape_cast %166 : vector<16xf32> to vector<16x1xf32>
    %168 = vector.broadcast %167 : vector<16x1xf32> to vector<16x16xf32>
    %169 = arith.cmpf ole, %165, %168 : vector<16x16xf32>
    %c16_i32_55 = arith.constant 16 : i32
    %170 = vector.broadcast %c16_i32_55 : i32 to vector<16x16xi32>
    %171 = arith.select %169, %31, %170 : vector<16x16xi1>, vector<16x16xi32>
    %cst_56 = arith.constant dense<2147483647> : vector<16xi32>
    %172 = vector.multi_reduction <minsi>, %171, %cst_56 [1] : vector<16x16xi32> to vector<16xi32>
    %173 = vector.shape_cast %172 : vector<16xi32> to vector<16x1xi32>
    %174 = vector.broadcast %173 : vector<16x1xi32> to vector<16x16xi32>
    %175 = arith.cmpi eq, %171, %174 : vector<16x16xi32>
    %176 = arith.extui %175 : vector<16x16xi1> to vector<16x16xi32>
    %177 = arith.sitofp %176 : vector<16x16xi32> to vector<16x16xf32>
    %178 = arith.truncf %177 : vector<16x16xf32> to vector<16x16xbf16>
    %cst_57 = arith.constant dense<0.000000e+00> : vector<16x32xf32>
    %179 = tpu.matmul %178, %35, %cst_57 {dimension_numbers = #tpu.dot_dimension_numbers<[1], [0], [0], [1], [0, 0, 1, 1], [], []>} : vector<16x16xbf16>, vector<16x32xbf16>, vector<16x32xf32> -> vector<16x32xf32>
    %180 = arith.addf %179, %39 : vector<16x32xf32>
    %cst_58 = arith.constant 0.000000e+00 : f32
    %181 = vector.broadcast %cst_58 : f32 to vector<16x32xf32>
    %182 = arith.maximumf %180, %181 : vector<16x32xf32>
    %183 = arith.truncf %182 : vector<16x32xf32> to vector<16x32xbf16>
    %c96 = arith.constant 96 : index
    %c0_59 = arith.constant 0 : index
    %184 = vector.load %arg11[%c96, %c0_59] : memref<128x32xbf16, #tpu.memory_space<vmem>>, vector<16x32xbf16>
    tpu.vector_store %arg11[%c96, %c0_59], %183 {strides = array<i32>} : memref<128x32xbf16, #tpu.memory_space<vmem>>, vector<16x32xbf16>,
    %cst_60 = arith.constant 0x7F800000 : f32
    %185 = vector.broadcast %cst_60 : f32 to vector<16x16xf32>
    %186 = arith.select %175, %185, %165 : vector<16x16xi1>, vector<16x16xf32>
    %cst_61 = arith.constant dense<0x7F800000> : vector<16xf32>
    %187 = vector.multi_reduction <minimumf>, %186, %cst_61 [1] : vector<16x16xf32> to vector<16xf32>
    %188 = vector.shape_cast %187 : vector<16xf32> to vector<16x1xf32>
    %189 = vector.broadcast %188 : vector<16x1xf32> to vector<16x16xf32>
    %190 = arith.cmpf ole, %186, %189 : vector<16x16xf32>
    %c16_i32_62 = arith.constant 16 : i32
    %191 = vector.broadcast %c16_i32_62 : i32 to vector<16x16xi32>
    %192 = arith.select %190, %31, %191 : vector<16x16xi1>, vector<16x16xi32>
    %cst_63 = arith.constant dense<2147483647> : vector<16xi32>
    %193 = vector.multi_reduction <minsi>, %192, %cst_63 [1] : vector<16x16xi32> to vector<16xi32>
    %194 = vector.shape_cast %193 : vector<16xi32> to vector<16x1xi32>
    %195 = vector.broadcast %194 : vector<16x1xi32> to vector<16x16xi32>
    %196 = arith.cmpi eq, %192, %195 : vector<16x16xi32>
    %197 = arith.extui %196 : vector<16x16xi1> to vector<16x16xi32>
    %198 = arith.sitofp %197 : vector<16x16xi32> to vector<16x16xf32>
    %199 = arith.truncf %198 : vector<16x16xf32> to vector<16x16xbf16>
    %cst_64 = arith.constant dense<0.000000e+00> : vector<16x32xf32>
    %200 = tpu.matmul %199, %35, %cst_64 {dimension_numbers = #tpu.dot_dimension_numbers<[1], [0], [0], [1], [0, 0, 1, 1], [], []>} : vector<16x16xbf16>, vector<16x32xbf16>, vector<16x32xf32> -> vector<16x32xf32>
    %201 = arith.addf %200, %39 : vector<16x32xf32>
    %cst_65 = arith.constant 0.000000e+00 : f32
    %202 = vector.broadcast %cst_65 : f32 to vector<16x32xf32>
    %203 = arith.maximumf %201, %202 : vector<16x32xf32>
    %204 = arith.truncf %203 : vector<16x32xf32> to vector<16x32xbf16>
    %c112 = arith.constant 112 : index
    %c0_66 = arith.constant 0 : index
    %205 = vector.load %arg11[%c112, %c0_66] : memref<128x32xbf16, #tpu.memory_space<vmem>>, vector<16x32xbf16>
    tpu.vector_store %arg11[%c112, %c0_66], %204 {strides = array<i32>} : memref<128x32xbf16, #tpu.memory_space<vmem>>, vector<16x32xbf16>,
    %c0_67 = arith.constant 0 : index
    %c0_68 = arith.constant 0 : index
    %206 = vector.load %arg11[%c0_67, %c0_68] : memref<128x32xbf16, #tpu.memory_space<vmem>>, vector<128x32xbf16>
    %c0_69 = arith.constant 0 : index
    %c0_70 = arith.constant 0 : index
    %207 = vector.load %arg8[%c0_69, %c0_70] : memref<32x16xbf16, #tpu.memory_space<vmem>>, vector<32x16xbf16>
    %c0_71 = arith.constant 0 : index
    %c0_72 = arith.constant 0 : index
    %208 = vector.load %arg9[%c0_71, %c0_72] : memref<1x16xf32, #tpu.memory_space<vmem>>, vector<1x16xf32>
    %cst_73 = arith.constant dense<0.000000e+00> : vector<128x16xf32>
    %209 = tpu.matmul %206, %207, %cst_73 {dimension_numbers = #tpu.dot_dimension_numbers<[1], [0], [0], [1], [0, 0, 1, 1], [], []>} : vector<128x32xbf16>, vector<32x16xbf16>, vector<128x16xf32> -> vector<128x16xf32>
    %210 = vector.broadcast %208 : vector<1x16xf32> to vector<128x16xf32>
    %211 = arith.addf %209, %210 : vector<128x16xf32>
    %cst_74 = arith.constant 0.000000e+00 : f32
    %212 = vector.broadcast %cst_74 : f32 to vector<128x16xf32>
    %213 = arith.maximumf %211, %212 : vector<128x16xf32>
    %214 = vector.extract_strided_slice %213 {offsets = [0, 0], sizes = [16, 16], strides = [1, 1]} : vector<128x16xf32> to vector<16x16xf32>
    %215 = vector.extract_strided_slice %213 {offsets = [16, 0], sizes = [16, 16], strides = [1, 1]} : vector<128x16xf32> to vector<16x16xf32>
    %216 = arith.maximumf %214, %215 : vector<16x16xf32>
    %217 = vector.extract_strided_slice %213 {offsets = [32, 0], sizes = [16, 16], strides = [1, 1]} : vector<128x16xf32> to vector<16x16xf32>
    %218 = arith.maximumf %216, %217 : vector<16x16xf32>
    %219 = vector.extract_strided_slice %213 {offsets = [48, 0], sizes = [16, 16], strides = [1, 1]} : vector<128x16xf32> to vector<16x16xf32>
    %220 = arith.maximumf %218, %219 : vector<16x16xf32>
    %221 = vector.extract_strided_slice %213 {offsets = [64, 0], sizes = [16, 16], strides = [1, 1]} : vector<128x16xf32> to vector<16x16xf32>
    %222 = arith.maximumf %220, %221 : vector<16x16xf32>
    %223 = vector.extract_strided_slice %213 {offsets = [80, 0], sizes = [16, 16], strides = [1, 1]} : vector<128x16xf32> to vector<16x16xf32>
    %224 = arith.maximumf %222, %223 : vector<16x16xf32>
    %225 = vector.extract_strided_slice %213 {offsets = [96, 0], sizes = [16, 16], strides = [1, 1]} : vector<128x16xf32> to vector<16x16xf32>
    %226 = arith.maximumf %224, %225 : vector<16x16xf32>
    %227 = vector.extract_strided_slice %213 {offsets = [112, 0], sizes = [16, 16], strides = [1, 1]} : vector<128x16xf32> to vector<16x16xf32>
    %228 = arith.maximumf %226, %227 : vector<16x16xf32>
    %229 = tpu.transpose %228, [1, 0] : vector<16x16xf32> -> vector<16x16xf32>
    %c0_75 = arith.constant 0 : index
    %c0_76 = arith.constant 0 : index
    %c0_77 = arith.constant 0 : index
    %230 = vector.load %arg10[%c0_75, %c0_76, %c0_77] : memref<1x16x16xf32, #tpu.memory_space<vmem>>, vector<1x16x16xf32>
    %231 = vector.shape_cast %230 : vector<1x16x16xf32> to vector<16x16xf32>
    %232 = vector.shape_cast %229 : vector<16x16xf32> to vector<1x16x16xf32>
    tpu.vector_store %arg10[%c0_75, %c0_76, %c0_77], %232 {strides = array<i32>} : memref<1x16x16xf32, #tpu.memory_space<vmem>>, vector<1x16x16xf32>,
    return
  }
  func.func @transform_0(%arg0: i32, %arg1: i32) -> (i32, i32, i32) {
    %c0_i32 = arith.constant 0 : i32
    %c0_i32_0 = arith.constant 0 : i32
    return %arg0, %arg1, %c0_i32 : i32, i32, i32
  }
  func.func @transform_1(%arg0: i32, %arg1: i32) -> (i32, i32, i32) {
    %c0_i32 = arith.constant 0 : i32
    %c0_i32_0 = arith.constant 0 : i32
    %c0_i32_1 = arith.constant 0 : i32
    return %arg0, %c0_i32, %c0_i32_0 : i32, i32, i32
  }
  func.func @transform_2(%arg0: i32, %arg1: i32) -> (i32, i32, i32) {
    %c0_i32 = arith.constant 0 : i32
    %c0_i32_0 = arith.constant 0 : i32
    %c0_i32_1 = arith.constant 0 : i32
    return %arg0, %c0_i32, %c0_i32_0 : i32, i32, i32
  }
  func.func @transform_3(%arg0: i32, %arg1: i32) -> (i32, i32, i32) {
    %c0_i32 = arith.constant 0 : i32
    %c0_i32_0 = arith.constant 0 : i32
    %c0_i32_1 = arith.constant 0 : i32
    return %arg0, %c0_i32, %c0_i32_0 : i32, i32, i32
  }
  func.func @transform_4(%arg0: i32, %arg1: i32) -> (i32, i32) {
    %c0_i32 = arith.constant 0 : i32
    %c0_i32_0 = arith.constant 0 : i32
    %c0_i32_1 = arith.constant 0 : i32
    return %c0_i32, %c0_i32_0 : i32, i32
  }
  func.func @transform_5(%arg0: i32, %arg1: i32) -> (i32, i32) {
    %c0_i32 = arith.constant 0 : i32
    %c0_i32_0 = arith.constant 0 : i32
    %c0_i32_1 = arith.constant 0 : i32
    return %c0_i32, %c0_i32_0 : i32, i32
  }
  func.func @transform_6(%arg0: i32, %arg1: i32) -> (i32, i32) {
    %c0_i32 = arith.constant 0 : i32
    %c0_i32_0 = arith.constant 0 : i32
    %c0_i32_1 = arith.constant 0 : i32
    return %c0_i32, %c0_i32_0 : i32, i32
  }
  func.func @transform_7(%arg0: i32, %arg1: i32) -> (i32, i32) {
    %c0_i32 = arith.constant 0 : i32
    %c0_i32_0 = arith.constant 0 : i32
    %c0_i32_1 = arith.constant 0 : i32
    return %c0_i32, %c0_i32_0 : i32, i32
  }
  func.func @transform_8(%arg0: i32, %arg1: i32) -> (i32, i32, i32) {
    %c0_i32 = arith.constant 0 : i32
    %c0_i32_0 = arith.constant 0 : i32
    return %arg0, %c0_i32, %arg1 : i32, i32, i32
  }
}

</mosaic_0001>

<llo_original>
// kernel: tpu_custom_call.1
$region0: #{tpu_custom_call.1}
  #allocation0 [shape = 'u32[]', space=smem, size = 0x4, offset = 0x4, fixed_abs, tag = 'smem constant byte address 0x4 - core index']
  #allocation1 [shape = 'u32[144,128]{1,0:T(1,128)}', space=vmem, size = 0x12000, scoped, tag = 'internal scratch']
  #allocation2 [shape = 'bf16[128,32]{1,0:T(16,128)(2,1)}', space=vmem, size = 0x8000, scoped, tag = 'scratch operand']
  %s0 = inlined_call_operand.vmem [shape: f32[2,16,4], index: 0, kind: input, shape index: {}]
  %s1 = inlined_call_operand.vmem [shape: f32[2,4,16], index: 1, kind: input, shape index: {}]
  %s2 = inlined_call_operand.vmem [shape: f32[2,1,16], index: 2, kind: input, shape index: {}]
  %s3 = inlined_call_operand.vmem [shape: bf16[2,16,32], index: 3, kind: input, shape index: {}]
  %s4 = inlined_call_operand.vmem [shape: bf16[4,32], index: 4, kind: input, shape index: {}]
  %s5 = inlined_call_operand.vmem [shape: f32[1,32], index: 5, kind: input, shape index: {}]
  %s6 = inlined_call_operand.vmem [shape: bf16[32,16], index: 6, kind: input, shape index: {}]
  %s7 = inlined_call_operand.vmem [shape: f32[1,16], index: 7, kind: input, shape index: {}]
  %s8 = inlined_call_operand.hbm [shape: f32[2,16,16], index: 8, kind: output, shape index: {}]
  %s9 = sld [smem:[#allocation0]]
  $region65: #{tpu_custom_call.1} parent=0
    _
  %s11 = ssub.s32 1, %s9
  %s12 = scalar_select 0, %s11, %s9
  $region1: #{tpu_custom_call.1} parent=0
    #allocation3 [shape = 'u8[16384]{0}', space=vmem, size = 0x4000, scoped, tag = 'output window, operand 0']
    #allocation4 [shape = 's32[2]{0}', space=sflag, size = 0x8, scoped, tag = 'scoped memory for tpu_custom_call.1']
    %13 = vsyncpa [#allocation4], 0
    %s14 = scalar_lea.sflag [#allocation4], 1
    %15 = vsyncpa %s14, 0
    loop: start=0, step=1, limit=4
    $region2: #{tpu_custom_call.1} parent=1 // loop_pre_header
      _
    $region3: #{tpu_custom_call.1} parent=1 // loop_header
      %s17 = sphi 0, %s21
      %p18 = scmp.ge.s32.totalorder %s17, 4
      %s24 = sphi 0, %s36
      %s25 = sphi 0, %s32
      %s26 = sphi 0, %s24
      %s27 = sphi 0, %s25
      %s28 = sphi 0, %s26
      %s29 = sphi 0, %s27
      %s41 = sphi 0, %s43
      %s44 = sphi 0, %s41
      %s45 = sphi 0, %s44
      %s61 = sphi 0, %s45
      %s67 = sphi 0, %s69
      %s70 = sphi 0, %s67
      %s71 = sphi 0, %s70
      %s87 = sphi 0, %s71
      %s93 = sphi 0, %s95
      %s96 = sphi 0, %s93
      %s97 = sphi 0, %s96
      %s113 = sphi 0, %s97
      %s119 = sphi 0, %s121
      %s122 = sphi 0, %s119
      %s123 = sphi 0, %s122
      %s139 = sphi 0, %s123
      %s143 = sphi 0, %s143
      %s145 = sphi 0, %s143
      %s146 = sphi 0, %s145
      %s160 = sphi 0, %s146
      %s164 = sphi 0, %s164
      %s166 = sphi 0, %s164
      %s167 = sphi 0, %s166
      %s181 = sphi 0, %s167
      %s185 = sphi 0, %s185
      %s187 = sphi 0, %s185
      %s188 = sphi 0, %s187
      %s202 = sphi 0, %s188
      %s206 = sphi 0, %s206
      %s208 = sphi 0, %s206
      %s209 = sphi 0, %s208
      %s223 = sphi 0, %s209
      %s231 = sphi 0, %s233
      %s234 = sphi 0, %s231
      %s235 = sphi 0, %s234
      %s251 = sphi 0, %s235
    $region4: #{tpu_custom_call.1} parent=1 // loop_header_branch
      %20 = sbr.rel (%p18) target = $region8
    $region5: #{tpu_custom_call.1} parent=1 // loop_body
      %s22 = ssub.s32 %s17, 1
      %s23 = ssub.s32 %s17, 2
      %s30 = sadd.s32 1, %s25
      %p31 = scmp.ge.s32.totalorder %s30, 1
      %s32 = scalar_select %p31, 0, %s30
      %s33 = sadd.s32 1, %s24
      %s34 = scalar_select %p31, %s33, %s24
      %p35 = scmp.ge.s32.totalorder %s34, 2
      %s36 = scalar_select %p35, 0, %s34
      %s37 = ssub.s32 %s24, %s36
      %s38 = ssub.s32 %s25, %s32
      %s39 = sor.u32 %s37, %s38
      %p40 = scmp.eq.s32.totalorder %s39, 0
      %s42 = sadd.s32 %s41, 1
      %s43 = scalar_select %p40, %s41, %s42
      %p46 = pneg %p40
      %p47 = scmp.eq.s32.totalorder %s17, 1
      %p48 = por %p46, %p47
      %p49 = scmp.ne.s32.totalorder %s41, %s44
      %p50 = scmp.eq.s32.totalorder %s17, 0
      %p51 = por %p49, %p50
      %p52 = scmp.ne.s32.totalorder %s41, %s44
      %p53 = scmp.eq.s32.totalorder %s22, 1
      %p54 = por %p52, %p53
      %p55 = scmp.ne.s32.totalorder %s44, %s45
      %p56 = scmp.eq.s32.totalorder %s22, 0
      %p57 = por %p55, %p56
      %p58 = scmp.ne.s32.totalorder %s44, %s45
      %p59 = scmp.eq.s32.totalorder %s23, 1
      %p60 = por %p58, %p59
      %p62 = scmp.ne.s32.totalorder %s45, %s61
      %p63 = scmp.eq.s32.totalorder %s23, 0
      %p64 = por %p62, %p63
      %s65 = ssub.s32 %s24, %s36
      %p66 = scmp.eq.s32.totalorder %s65, 0
      %s68 = sadd.s32 %s67, 1
      %s69 = scalar_select %p66, %s67, %s68
      %p72 = pneg %p66
      %p73 = scmp.eq.s32.totalorder %s17, 1
      %p74 = por %p72, %p73
      %p75 = scmp.ne.s32.totalorder %s67, %s70
      %p76 = scmp.eq.s32.totalorder %s17, 0
      %p77 = por %p75, %p76
      %p78 = scmp.ne.s32.totalorder %s67, %s70
      %p79 = scmp.eq.s32.totalorder %s22, 1
      %p80 = por %p78, %p79
      %p81 = scmp.ne.s32.totalorder %s70, %s71
      %p82 = scmp.eq.s32.totalorder %s22, 0
      %p83 = por %p81, %p82
      %p84 = scmp.ne.s32.totalorder %s70, %s71
      %p85 = scmp.eq.s32.totalorder %s23, 1
      %p86 = por %p84, %p85
      %p88 = scmp.ne.s32.totalorder %s71, %s87
      %p89 = scmp.eq.s32.totalorder %s23, 0
      %p90 = por %p88, %p89
      %s91 = ssub.s32 %s24, %s36
      %p92 = scmp.eq.s32.totalorder %s91, 0
      %s94 = sadd.s32 %s93, 1
      %s95 = scalar_select %p92, %s93, %s94
      %p98 = pneg %p92
      %p99 = scmp.eq.s32.totalorder %s17, 1
      %p100 = por %p98, %p99
      %p101 = scmp.ne.s32.totalorder %s93, %s96
      %p102 = scmp.eq.s32.totalorder %s17, 0
      %p103 = por %p101, %p102
      %p104 = scmp.ne.s32.totalorder %s93, %s96
      %p105 = scmp.eq.s32.totalorder %s22, 1
      %p106 = por %p104, %p105
      %p107 = scmp.ne.s32.totalorder %s96, %s97
      %p108 = scmp.eq.s32.totalorder %s22, 0
      %p109 = por %p107, %p108
      %p110 = scmp.ne.s32.totalorder %s96, %s97
      %p111 = scmp.eq.s32.totalorder %s23, 1
      %p112 = por %p110, %p111
      %p114 = scmp.ne.s32.totalorder %s97, %s113
      %p115 = scmp.eq.s32.totalorder %s23, 0
      %p116 = por %p114, %p115
      %s117 = ssub.s32 %s24, %s36
      %p118 = scmp.eq.s32.totalorder %s117, 0
      %s120 = sadd.s32 %s119, 1
      %s121 = scalar_select %p118, %s119, %s120
      %p124 = pneg %p118
      %p125 = scmp.eq.s32.totalorder %s17, 1
      %p126 = por %p124, %p125
      %p127 = scmp.ne.s32.totalorder %s119, %s122
      %p128 = scmp.eq.s32.totalorder %s17, 0
      %p129 = por %p127, %p128
      %p130 = scmp.ne.s32.totalorder %s119, %s122
      %p131 = scmp.eq.s32.totalorder %s22, 1
      %p132 = por %p130, %p131
      %p133 = scmp.ne.s32.totalorder %s122, %s123
      %p134 = scmp.eq.s32.totalorder %s22, 0
      %p135 = por %p133, %p134
      %p136 = scmp.ne.s32.totalorder %s122, %s123
      %p137 = scmp.eq.s32.totalorder %s23, 1
      %p138 = por %p136, %p137
      %p140 = scmp.ne.s32.totalorder %s123, %s139
      %p141 = scmp.eq.s32.totalorder %s23, 0
      %p142 = por %p140, %p141
      %s144 = sadd.s32 %s143, 1
      %p147 = scmp.eq.s32.totalorder %s17, 1
      %p148 = scmp.ne.s32.totalorder %s143, %s145
      %p149 = scmp.eq.s32.totalorder %s17, 0
      %p150 = por %p148, %p149
      %p151 = scmp.ne.s32.totalorder %s143, %s145
      %p152 = scmp.eq.s32.totalorder %s22, 1
      %p153 = por %p151, %p152
      %p154 = scmp.ne.s32.totalorder %s145, %s146
      %p155 = scmp.eq.s32.totalorder %s22, 0
      %p156 = por %p154, %p155
      %p157 = scmp.ne.s32.totalorder %s145, %s146
      %p158 = scmp.eq.s32.totalorder %s23, 1
      %p159 = por %p157, %p158
      %p161 = scmp.ne.s32.totalorder %s146, %s160
      %p162 = scmp.eq.s32.totalorder %s23, 0
      %p163 = por %p161, %p162
      %s165 = sadd.s32 %s164, 1
      %p168 = scmp.eq.s32.totalorder %s17, 1
      %p169 = scmp.ne.s32.totalorder %s164, %s166
      %p170 = scmp.eq.s32.totalorder %s17, 0
      %p171 = por %p169, %p170
      %p172 = scmp.ne.s32.totalorder %s164, %s166
      %p173 = scmp.eq.s32.totalorder %s22, 1
      %p174 = por %p172, %p173
      %p175 = scmp.ne.s32.totalorder %s166, %s167
      %p176 = scmp.eq.s32.totalorder %s22, 0
      %p177 = por %p175, %p176
      %p178 = scmp.ne.s32.totalorder %s166, %s167
      %p179 = scmp.eq.s32.totalorder %s23, 1
      %p180 = por %p178, %p179
      %p182 = scmp.ne.s32.totalorder %s167, %s181
      %p183 = scmp.eq.s32.totalorder %s23, 0
      %p184 = por %p182, %p183
      %s186 = sadd.s32 %s185, 1
      %p189 = scmp.eq.s32.totalorder %s17, 1
      %p190 = scmp.ne.s32.totalorder %s185, %s187
      %p191 = scmp.eq.s32.totalorder %s17, 0
      %p192 = por %p190, %p191
      %p193 = scmp.ne.s32.totalorder %s185, %s187
      %p194 = scmp.eq.s32.totalorder %s22, 1
      %p195 = por %p193, %p194
      %p196 = scmp.ne.s32.totalorder %s187, %s188
      %p197 = scmp.eq.s32.totalorder %s22, 0
      %p198 = por %p196, %p197
      %p199 = scmp.ne.s32.totalorder %s187, %s188
      %p200 = scmp.eq.s32.totalorder %s23, 1
      %p201 = por %p199, %p200
      %p203 = scmp.ne.s32.totalorder %s188, %s202
      %p204 = scmp.eq.s32.totalorder %s23, 0
      %p205 = por %p203, %p204
      %s207 = sadd.s32 %s206, 1
      %p210 = scmp.eq.s32.totalorder %s17, 1
      %p211 = scmp.ne.s32.totalorder %s206, %s208
      %p212 = scmp.eq.s32.totalorder %s17, 0
      %p213 = por %p211, %p212
      %p214 = scmp.ne.s32.totalorder %s206, %s208
      %p215 = scmp.eq.s32.totalorder %s22, 1
      %p216 = por %p214, %p215
      %p217 = scmp.ne.s32.totalorder %s208, %s209
      %p218 = scmp.eq.s32.totalorder %s22, 0
      %p219 = por %p217, %p218
      %p220 = scmp.ne.s32.totalorder %s208, %s209
      %p221 = scmp.eq.s32.totalorder %s23, 1
      %p222 = por %p220, %p221
      %p224 = scmp.ne.s32.totalorder %s209, %s223
      %p225 = scmp.eq.s32.totalorder %s23, 0
      %p226 = por %p224, %p225
      %s227 = ssub.s32 %s24, %s36
      %s228 = ssub.s32 %s25, %s32
      %s229 = sor.u32 %s227, %s228
      %p230 = scmp.eq.s32.totalorder %s229, 0
      %s232 = sadd.s32 %s231, 1
      %s233 = scalar_select %p230, %s231, %s232
      %p236 = pneg %p230
      %p237 = scmp.eq.s32.totalorder %s17, 1
      %p238 = por %p236, %p237
      %p239 = scmp.ne.s32.totalorder %s231, %s234
      %p240 = scmp.eq.s32.totalorder %s17, 0
      %p241 = por %p239, %p240
      %p242 = scmp.ne.s32.totalorder %s231, %s234
      %p243 = scmp.eq.s32.totalorder %s22, 1
      %p244 = por %p242, %p243
      %p245 = scmp.ne.s32.totalorder %s234, %s235
      %p246 = scmp.eq.s32.totalorder %s22, 0
      %p247 = por %p245, %p246
      %p248 = scmp.ne.s32.totalorder %s234, %s235
      %p249 = scmp.eq.s32.totalorder %s23, 1
      %p250 = por %p248, %p249
      %p252 = scmp.ne.s32.totalorder %s235, %s251
      %p253 = scmp.eq.s32.totalorder %s23, 0
      %p254 = por %p252, %p253
      %p255 = scmp.le.s32.totalorder 1, %s17
      %p256 = scmp.lt.s32.totalorder %s17, 3
      %p257 = pnand %p255, %p256
      %p258 = pneg %p257
      // Predicated region
      $region9: #{tpu_custom_call.1} parent=5 // pred_check
        _
      $region10: #{tpu_custom_call.1} parent=5 // pred_check_branch
        %260 = sbr.rel (%p257) target = $region12
      $region11: #{tpu_custom_call.1} parent=5 // pred_region
        %s261 = ssub.s32 %s17, 1
        // Predicated region
        $region13: #{tpu_custom_call.1} parent=11 // pred_check
          %p262 = pneg %p156
        $region14: #{tpu_custom_call.1} parent=11 // pred_check_branch
          %264 = sbr.rel (%p262) target = $region16
        $region15: #{tpu_custom_call.1} parent=11 // pred_region
          _
        $region16: #{tpu_custom_call.1} parent=11 // pred_fallthru
          _
        // Predicated region
        $region17: #{tpu_custom_call.1} parent=11 // pred_check
          %p265 = pneg %p177
        $region18: #{tpu_custom_call.1} parent=11 // pred_check_branch
          %267 = sbr.rel (%p265) target = $region20
        $region19: #{tpu_custom_call.1} parent=11 // pred_region
          _
        $region20: #{tpu_custom_call.1} parent=11 // pred_fallthru
          _
        // Predicated region
        $region21: #{tpu_custom_call.1} parent=11 // pred_check
          %p268 = pneg %p198
        $region22: #{tpu_custom_call.1} parent=11 // pred_check_branch
          %270 = sbr.rel (%p268) target = $region24
        $region23: #{tpu_custom_call.1} parent=11 // pred_region
          _
        $region24: #{tpu_custom_call.1} parent=11 // pred_fallthru
          _
        // Predicated region
        $region25: #{tpu_custom_call.1} parent=11 // pred_check
          %p271 = pneg %p219
        $region26: #{tpu_custom_call.1} parent=11 // pred_check_branch
          %273 = sbr.rel (%p271) target = $region28
        $region27: #{tpu_custom_call.1} parent=11 // pred_region
          _
        $region28: #{tpu_custom_call.1} parent=11 // pred_fallthru
          _
      $region12: #{tpu_custom_call.1} parent=5 // pred_fallthru
        _
      %p274 = scmp.lt.s32.totalorder %s17, 2
      // Predicated region
      $region29: #{tpu_custom_call.1} parent=5 // pred_check
        %p275 = pneg %p274
      $region30: #{tpu_custom_call.1} parent=5 // pred_check_branch
        %277 = sbr.rel (%p275) target = $region32
      $region31: #{tpu_custom_call.1} parent=5 // pred_region
        // Predicated region
        $region33: #{tpu_custom_call.1} parent=31 // pred_check
          %p278 = pneg %p51
        $region34: #{tpu_custom_call.1} parent=31 // pred_check_branch
          %280 = sbr.rel (%p278) target = $region36
        $region35: #{tpu_custom_call.1} parent=31 // pred_region
          %s281 = smul.u32 2, %s25
          %p282 = scmp.lt.s32.totalorder %s24, 1
          %s283 = scalar_select %p282, %s24, 1
          %p284 = scmp.lt.s32.totalorder %s281, 1
          %s285 = scalar_select %p284, %s281, 1
          %s286 = smul.addr %s283, 2
          %s287 = sadd.s32 %s285, %s286
          %s288 = smul.addr %s287, 8
          %s289 = scalar_lea.vmem %s0, %s288
          %s290 = smul.u32 2, %s25
        $region36: #{tpu_custom_call.1} parent=31 // pred_fallthru
          _
        // Predicated region
        $region37: #{tpu_custom_call.1} parent=31 // pred_check
          %p291 = pneg %p77
        $region38: #{tpu_custom_call.1} parent=31 // pred_check_branch
          %293 = sbr.rel (%p291) target = $region40
        $region39: #{tpu_custom_call.1} parent=31 // pred_region
          %p294 = scmp.lt.s32.totalorder %s24, 1
          %s295 = scalar_select %p294, %s24, 1
          %s296 = smul.addr %s295, 4
          %s297 = scalar_lea.vmem %s1, %s296
        $region40: #{tpu_custom_call.1} parent=31 // pred_fallthru
          _
        // Predicated region
        $region41: #{tpu_custom_call.1} parent=31 // pred_check
          %p298 = pneg %p103
        $region42: #{tpu_custom_call.1} parent=31 // pred_check_branch
          %300 = sbr.rel (%p298) target = $region44
        $region43: #{tpu_custom_call.1} parent=31 // pred_region
          %p301 = scmp.lt.s32.totalorder %s24, 1
          %s302 = scalar_select %p301, %s24, 1
          %s303 = scalar_lea.vmem %s2, %s302
        $region44: #{tpu_custom_call.1} parent=31 // pred_fallthru
          _
        // Predicated region
        $region45: #{tpu_custom_call.1} parent=31 // pred_check
          %p304 = pneg %p129
        $region46: #{tpu_custom_call.1} parent=31 // pred_check_branch
          %306 = sbr.rel (%p304) target = $region48
        $region47: #{tpu_custom_call.1} parent=31 // pred_region
          %p307 = scmp.lt.s32.totalorder %s24, 1
          %s308 = scalar_select %p307, %s24, 1
          %s309 = smul.addr %s308, 2
          %s310 = smul.addr %s309, 4
          %s311 = scalar_lea.vmem %s3, %s310
        $region48: #{tpu_custom_call.1} parent=31 // pred_fallthru
          _
      $region32: #{tpu_custom_call.1} parent=5 // pred_fallthru
        _
      %p312 = scmp.le.s32.totalorder 1, %s17
      %p313 = scmp.lt.s32.totalorder %s17, 3
      %p314 = pnand %p312, %p313
      %p315 = pneg %p314
      // Predicated region
      $region49: #{tpu_custom_call.1} parent=5 // pred_check
        _
      $region50: #{tpu_custom_call.1} parent=5 // pred_check_branch
        %317 = sbr.rel (%p314) target = $region52
      $region51: #{tpu_custom_call.1} parent=5 // pred_region
        %s318 = ssub.s32 %s17, 1
        %s319 = smul.u32 2, %s27
        %p320 = scmp.lt.s32.totalorder %s26, 1
        %s321 = scalar_select %p320, %s26, 1
        %p322 = scmp.lt.s32.totalorder %s319, 1
        %s323 = scalar_select %p322, %s319, 1
        %s324 = smul.addr %s321, 2
        %s325 = sadd.s32 %s323, %s324
        %s326 = smul.addr %s325, 8
        %s327 = scalar_lea.vmem %s0, %s326
        %p328 = pneg %p57
        %p329 = pneg %p54
        %p330 = scmp.lt.s32.totalorder %s26, 1
        %s331 = scalar_select %p330, %s26, 1
        %s332 = smul.addr %s331, 4
        %s333 = scalar_lea.vmem %s1, %s332
        %p334 = pneg %p83
        %p335 = pneg %p80
        %p336 = scmp.lt.s32.totalorder %s26, 1
        %s337 = scalar_select %p336, %s26, 1
        %s338 = scalar_lea.vmem %s2, %s337
        %p339 = pneg %p109
        %p340 = pneg %p106
        %p341 = scmp.lt.s32.totalorder %s26, 1
        %s342 = scalar_select %p341, %s26, 1
        %s343 = smul.addr %s342, 2
        %s344 = smul.addr %s343, 4
        %s345 = scalar_lea.vmem %s3, %s344
        %p346 = pneg %p135
        %p347 = pneg %p132
        %p348 = pneg %p156
        %p349 = pneg %p153
        %p350 = pneg %p177
        %p351 = pneg %p174
        %p352 = pneg %p198
        %p353 = pneg %p195
        %p354 = pneg %p219
        %p355 = pneg %p216
        %p356 = pneg %p247
        %p357 = pneg %p244
        %s358 = sand.u32 %s234, 1
        %s359 = scalar_lea.sflag [#allocation4], %s358
        %s360 = sand.u32 %s234, 1
        %s361 = smul.addr %s360, 16
        %s362 = scalar_lea.vmem [#allocation3], %s361
        %s363 = smul.u32 2, %s27
        %p364 = scmp.lt.s32.totalorder %s26, 1
        %s365 = scalar_select %p364, %s26, 1
        %p366 = scmp.lt.s32.totalorder %s363, 1
        %s367 = scalar_select %p366, %s363, 1
        %s368 = smul.addr %s365, 2
        %s369 = sadd.s32 %s367, %s368
        %s370 = smul.addr %s369, 8
        %s371 = scalar_lea.vmem %s0, %s370
        %s372 = smul.u32 2, %s27
        %p373 = scmp.lt.s32.totalorder %s26, 1
        %s374 = scalar_select %p373, %s26, 1
        %s375 = smul.addr %s374, 4
        %s376 = scalar_lea.vmem %s1, %s375
        %p377 = scmp.lt.s32.totalorder %s26, 1
        %s378 = scalar_select %p377, %s26, 1
        %s379 = scalar_lea.vmem %s2, %s378
        %p380 = scmp.lt.s32.totalorder %s26, 1
        %s381 = scalar_select %p380, %s26, 1
        %s382 = smul.addr %s381, 2
        %s383 = smul.addr %s382, 4
        %s384 = scalar_lea.vmem %s3, %s383
        %v386 = vld [vmem:[%s371] sm:$0xff]
        %v387 = vld [vmem:[%s371 + $0x8] sm:$0xff]
        %v388 = vld [vmem:[%s376] sm:$0xf]
        %390 = vset.pattern.permute.xlu0 0
        %391 = vperm.xlu0 %390, %v386
        %v392 = vpop.permute.xlu0 %391
        %395 = vset.pattern.permute.xlu0 0
        %396 = vperm.xlu0 %395, %v387
        %v397 = vpop.permute.xlu0 %396
        %v399 = vlaneseq
        %v400 = vshrl.u32 %v399, 7
        %v401 = vsub.s32 0, %v400
        %v402 = vrot.slane %v388, %v401
        %v403 = vsub.f32 %v392, %v402
        %v404 = vsub.f32 %v397, %v402
        %v405 = vmul.f32 %v403, %v403
        %v406 = vmul.f32 %v404, %v404
        %407 = vset.pattern.permute.xlu0 1
        %408 = vperm.xlu0 %407, %v386
        %v409 = vpop.permute.xlu0 %408
        %411 = vset.pattern.permute.xlu0 1
        %412 = vperm.xlu0 %411, %v387
        %v413 = vpop.permute.xlu0 %412
        %v415 = vlaneseq
        %v416 = vshrl.u32 %v415, 7
        %v417 = vsub.s32 1, %v416
        %v418 = vrot.slane %v388, %v417
        %v419 = vsub.f32 %v409, %v418
        %v420 = vsub.f32 %v413, %v418
        %v421 = vmul.f32 %v419, %v419
        %v422 = vmul.f32 %v420, %v420
        %v423 = vadd.f32 %v405, %v421
        %v424 = vadd.f32 %v406, %v422
        %425 = vset.pattern.permute.xlu0 2
        %426 = vperm.xlu0 %425, %v386
        %v427 = vpop.permute.xlu0 %426
        %429 = vset.pattern.permute.xlu0 2
        %430 = vperm.xlu0 %429, %v387
        %v431 = vpop.permute.xlu0 %430
        %v433 = vlaneseq
        %v434 = vshrl.u32 %v433, 7
        %v435 = vsub.s32 2, %v434
        %v436 = vrot.slane %v388, %v435
        %v437 = vsub.f32 %v427, %v436
        %v438 = vsub.f32 %v431, %v436
        %v439 = vmul.f32 %v437, %v437
        %v440 = vmul.f32 %v438, %v438
        %v441 = vadd.f32 %v423, %v439
        %v442 = vadd.f32 %v424, %v440
        %443 = vset.pattern.permute.xlu0 3
        %444 = vperm.xlu0 %443, %v386
        %v445 = vpop.permute.xlu0 %444
        %447 = vset.pattern.permute.xlu0 3
        %448 = vperm.xlu0 %447, %v387
        %v449 = vpop.permute.xlu0 %448
        %v451 = vlaneseq
        %v452 = vshrl.u32 %v451, 7
        %v453 = vsub.s32 3, %v452
        %v454 = vrot.slane %v388, %v453
        %v455 = vsub.f32 %v445, %v454
        %v456 = vsub.f32 %v449, %v454
        %v457 = vmul.f32 %v455, %v455
        %v458 = vmul.f32 %v456, %v456
        %v459 = vadd.f32 %v441, %v457
        %v460 = vadd.f32 %v442, %v458
        %v461 = vlaneseq
        %v462 = vand.u32 %v461, 127
        %v463 = vld [vmem:[%s4] sm:$0x3]
        %v464 = vld [vmem:[%s5] sm:$0x1]
        %v465 = vld [vmem:[%s384] sm:$0xf]
        %v466 = vld [vmem:[%s384 + $0x4] sm:$0xf]
        %v467 = vpack.c.bf16 %v387, %v386
        %v469 = vlaneseq
        %v470 = vshrl.u32 %v469, 7
        %v471 = vsub.s32 0, %v470
        %v472 = vrot.slane %v464, %v471
        %vm474 = vcmask 31744
        %v476 = vsel %vm474, %v467, 0
        %vm478 = vcmask 1041408
        %v480 = vsel %vm478, %v463, 0
        %482 = vmatprep.subr.bf16.mxu0 0
        %483 = vmatpush1.bf16.msra.mxu0 %v480
        %484 = vmatprep.subr.bf16.mxu0 0
        %485 = vmatpush1.bf16.msra.mxu0 0
        %486 = vmatprep.subr.bf16.mxu0 0
        %487 = vmatpush1.bf16.msra.mxu0 0
        %488 = vmatprep.subr.bf16.mxu0 0
        %489 = vmatpush1.bf16.msra.mxu0 0
        %490 = vmatprep.subr.bf16.mxu0 0
        %491 = vmatpush1.bf16.msra.mxu0 0
        %492 = vmatprep.subr.bf16.mxu0 0
        %493 = vmatpush1.bf16.msra.mxu0 0
        %494 = vmatprep.subr.bf16.mxu0 0
        %495 = vmatpush1.bf16.msra.mxu0 0
        %496 = vmatprep.subr.bf16.mxu0 0
        %497 = vmatpush1.bf16.msra.mxu0 0
        %498 = vmatprep.subr.bf16.mxu0 0
        %499 = vmatpush1.bf16.msra.mxu0 0
        %500 = vmatprep.subr.bf16.mxu0 0
        %501 = vmatpush1.bf16.msra.mxu0 0
        %502 = vmatprep.subr.bf16.mxu0 0
        %503 = vmatpush1.bf16.msra.mxu0 0
        %504 = vmatprep.subr.bf16.mxu0 0
        %505 = vmatpush1.bf16.msra.mxu0 0
        %506 = vmatprep.subr.bf16.mxu0 0
        %507 = vmatpush1.bf16.msra.mxu0 0
        %508 = vmatprep.subr.bf16.mxu0 0
        %509 = vmatpush1.bf16.msra.mxu0 0
        %510 = vmatprep.subr.bf16.mxu0 0
        %511 = vmatpush1.bf16.msra.mxu0 0
        %512 = vmatprep.subr.bf16.mxu0 0
        %513 = vmatpush1.bf16.msra.mxu0 0
        %514 = vmatprep.mubr.bf16.mxu0 0
        %515 = vmatmul.mubr.bf16.gmra.mrb[0].mxu0 %v476
        %v516 = vpop.f32.mrb[0].mxu0
        %v517 = vadd.f32 %v472, %v516
        %v518 = vpop.f32.mrb[0].mxu0
        %v519 = vpop.f32.mrb[0].mxu0
        %v520 = vadd.f32 %v472, %v519
        %v521 = vpop.f32.mrb[0].mxu0
        %522 = vdwg.mxu0
        %vm523 = vcmask 130048
        %v524 = vsel %vm523, %v459, inf
        %525 = vmin.xlane.f32.xlu0 %v524
        %v526 = vpop.xlane.xlu0 %525
        %v527 = vsel %vm523, %v460, inf
        %528 = vmin.xlane.f32.xlu0 %v527
        %v529 = vpop.xlane.xlu0 %528
        %vm530 = vcmp.le.f32.partialorder %v459, %v526
        %vm531 = vcmp.le.f32.partialorder %v460, %v529
        %v532 = vsel %vm530, %v462, 16
        %v533 = vsel %vm531, %v462, 16
        %v534 = vsel %vm523, %v532, 2147483647
        %v535 = vand.u32 %v534, 65535
        %v536 = vshra.s32 %v534, 16
        %v537 = vcvt.s32.f32 %v535
        %v538 = vcvt.s32.f32 %v536
        %539 = vmin.xlane.f32.xlu0 %v538
        %v540 = vpop.xlane.xlu0 %539
        %vm541 = vcmp.eq.f32.partialorder %v538, %v540
        %v542 = vsel %vm541, %v537, inf
        %543 = vmin.xlane.f32.xlu0 %v542
        %v544 = vpop.xlane.xlu0 %543
        %v545 = vcvt.f32.s32 %v544
        %v546 = vcvt.f32.s32 %v540
        %v547 = vshll.u32 %v546, 16
        %v548 = vadd.s32 %v547, %v545
        %v549 = vsel %vm523, %v533, 2147483647
        %v550 = vand.u32 %v549, 65535
        %v551 = vshra.s32 %v549, 16
        %v552 = vcvt.s32.f32 %v550
        %v553 = vcvt.s32.f32 %v551
        %554 = vmin.xlane.f32.xlu0 %v553
        %v555 = vpop.xlane.xlu0 %554
        %vm556 = vcmp.eq.f32.partialorder %v553, %v555
        %v557 = vsel %vm556, %v552, inf
        %558 = vmin.xlane.f32.xlu0 %v557
        %v559 = vpop.xlane.xlu0 %558
        %v560 = vcvt.f32.s32 %v559
        %v561 = vcvt.f32.s32 %v555
        %v562 = vshll.u32 %v561, 16
        %v563 = vadd.s32 %v562, %v560
        %vm564 = vcmp.eq.s32.totalorder %v532, %v548
        %vm565 = vcmp.eq.s32.totalorder %v533, %v563
        %v566 = vsel %vm564, 1, 0
        %v567 = vsel %vm565, 1, 0
        %v568 = vcvt.s32.f32 %v566
        %v569 = vcvt.s32.f32 %v567
        %v570 = vpack.c.bf16 %v569, %v568
        %v573 = vunpack.c.l.b16 %v465
        %v574 = vunpack.c.l.b16 %v466
        %v575 = vpack.c.b16 %v574, %v573
        %v578 = vsel %vm523, %v570, 0
        %580 = vmatprep.subr.bf16.mxu0 0
        %581 = vmatpush1.bf16.msra.mxu0 %v575
        %582 = vmatprep.subr.bf16.mxu0 0
        %583 = vmatpush1.bf16.msra.mxu0 0
        %584 = vmatprep.subr.bf16.mxu0 0
        %585 = vmatpush1.bf16.msra.mxu0 0
        %586 = vmatprep.subr.bf16.mxu0 0
        %587 = vmatpush1.bf16.msra.mxu0 0
        %588 = vmatprep.subr.bf16.mxu0 0
        %589 = vmatpush1.bf16.msra.mxu0 0
        %590 = vmatprep.subr.bf16.mxu0 0
        %591 = vmatpush1.bf16.msra.mxu0 0
        %592 = vmatprep.subr.bf16.mxu0 0
        %593 = vmatpush1.bf16.msra.mxu0 0
        %594 = vmatprep.subr.bf16.mxu0 0
        %595 = vmatpush1.bf16.msra.mxu0 0
        %596 = vmatprep.subr.bf16.mxu0 0
        %597 = vmatpush1.bf16.msra.mxu0 0
        %598 = vmatprep.subr.bf16.mxu0 0
        %599 = vmatpush1.bf16.msra.mxu0 0
        %600 = vmatprep.subr.bf16.mxu0 0
        %601 = vmatpush1.bf16.msra.mxu0 0
        %602 = vmatprep.subr.bf16.mxu0 0
        %603 = vmatpush1.bf16.msra.mxu0 0
        %604 = vmatprep.subr.bf16.mxu0 0
        %605 = vmatpush1.bf16.msra.mxu0 0
        %606 = vmatprep.subr.bf16.mxu0 0
        %607 = vmatpush1.bf16.msra.mxu0 0
        %608 = vmatprep.subr.bf16.mxu0 0
        %609 = vmatpush1.bf16.msra.mxu0 0
        %610 = vmatprep.subr.bf16.mxu0 0
        %611 = vmatpush1.bf16.msra.mxu0 0
        %612 = vmatprep.mubr.bf16.mxu0 0
        %613 = vmatmul.mubr.bf16.gmra.mrb[0].mxu0 %v578
        %v614 = vpop.f32.mrb[0].mxu0
        %v615 = vadd.f32 %v517, %v614
        %v616 = vpop.f32.mrb[0].mxu0
        %v617 = vpop.f32.mrb[0].mxu0
        %v618 = vadd.f32 %v520, %v617
        %v619 = vpop.f32.mrb[0].mxu0
        %620 = vdwg.mxu0
        %v621 = vmax.f32 %v615, 0.0
        %v622 = vmax.f32 %v618, 0.0
        %v623 = vpack.c.bf16 %v622, %v621
        %vm624 = vcmask 261120
        %625 = vst.msk [vmem:[#allocation2] sm:$0xff] %vm624, %v623
        %v626 = vsel %vm564, inf, %v459
        %v627 = vsel %vm565, inf, %v460
        %v628 = vsel %vm523, %v626, inf
        %629 = vmin.xlane.f32.xlu0 %v628
        %v630 = vpop.xlane.xlu0 %629
        %v631 = vsel %vm523, %v627, inf
        %632 = vmin.xlane.f32.xlu0 %v631
        %v633 = vpop.xlane.xlu0 %632
        %vm634 = vcmp.le.f32.partialorder %v626, %v630
        %vm635 = vcmp.le.f32.partialorder %v627, %v633
        %v636 = vsel %vm634, %v462, 16
        %v637 = vsel %vm635, %v462, 16
        %v638 = vsel %vm523, %v636, 2147483647
        %v639 = vand.u32 %v638, 65535
        %v640 = vshra.s32 %v638, 16
        %v641 = vcvt.s32.f32 %v639
        %v642 = vcvt.s32.f32 %v640
        %643 = vmin.xlane.f32.xlu0 %v642
        %v644 = vpop.xlane.xlu0 %643
        %vm645 = vcmp.eq.f32.partialorder %v642, %v644
        %v646 = vsel %vm645, %v641, inf
        %647 = vmin.xlane.f32.xlu0 %v646
        %v648 = vpop.xlane.xlu0 %647
        %v649 = vcvt.f32.s32 %v648
        %v650 = vcvt.f32.s32 %v644
        %v651 = vshll.u32 %v650, 16
        %v652 = vadd.s32 %v651, %v649
        %v653 = vsel %vm523, %v637, 2147483647
        %v654 = vand.u32 %v653, 65535
        %v655 = vshra.s32 %v653, 16
        %v656 = vcvt.s32.f32 %v654
        %v657 = vcvt.s32.f32 %v655
        %658 = vmin.xlane.f32.xlu0 %v657
        %v659 = vpop.xlane.xlu0 %658
        %vm660 = vcmp.eq.f32.partialorder %v657, %v659
        %v661 = vsel %vm660, %v656, inf
        %662 = vmin.xlane.f32.xlu0 %v661
        %v663 = vpop.xlane.xlu0 %662
        %v664 = vcvt.f32.s32 %v663
        %v665 = vcvt.f32.s32 %v659
        %v666 = vshll.u32 %v665, 16
        %v667 = vadd.s32 %v666, %v664
        %vm668 = vcmp.eq.s32.totalorder %v636, %v652
        %vm669 = vcmp.eq.s32.totalorder %v637, %v667
        %v670 = vsel %vm668, 1, 0
        %v671 = vsel %vm669, 1, 0
        %v672 = vcvt.s32.f32 %v670
        %v673 = vcvt.s32.f32 %v671
        %v674 = vpack.c.bf16 %v673, %v672
        %v676 = vsel %vm523, %v674, 0
        %678 = vmatprep.subr.bf16.mxu0 0
        %679 = vmatpush1.bf16.msra.mxu0 %v575
        %680 = vmatprep.subr.bf16.mxu0 0
        %681 = vmatpush1.bf16.msra.mxu0 0
        %682 = vmatprep.subr.bf16.mxu0 0
        %683 = vmatpush1.bf16.msra.mxu0 0
        %684 = vmatprep.subr.bf16.mxu0 0
        %685 = vmatpush1.bf16.msra.mxu0 0
        %686 = vmatprep.subr.bf16.mxu0 0
        %687 = vmatpush1.bf16.msra.mxu0 0
        %688 = vmatprep.subr.bf16.mxu0 0
        %689 = vmatpush1.bf16.msra.mxu0 0
        %690 = vmatprep.subr.bf16.mxu0 0
        %691 = vmatpush1.bf16.msra.mxu0 0
        %692 = vmatprep.subr.bf16.mxu0 0
        %693 = vmatpush1.bf16.msra.mxu0 0
        %694 = vmatprep.subr.bf16.mxu0 0
        %695 = vmatpush1.bf16.msra.mxu0 0
        %696 = vmatprep.subr.bf16.mxu0 0
        %697 = vmatpush1.bf16.msra.mxu0 0
        %698 = vmatprep.subr.bf16.mxu0 0
        %699 = vmatpush1.bf16.msra.mxu0 0
        %700 = vmatprep.subr.bf16.mxu0 0
        %701 = vmatpush1.bf16.msra.mxu0 0
        %702 = vmatprep.subr.bf16.mxu0 0
        %703 = vmatpush1.bf16.msra.mxu0 0
        %704 = vmatprep.subr.bf16.mxu0 0
        %705 = vmatpush1.bf16.msra.mxu0 0
        %706 = vmatprep.subr.bf16.mxu0 0
        %707 = vmatpush1.bf16.msra.mxu0 0
        %708 = vmatprep.subr.bf16.mxu0 0
        %709 = vmatpush1.bf16.msra.mxu0 0
        %710 = vmatprep.mubr.bf16.mxu0 0
        %711 = vmatmul.mubr.bf16.gmra.mrb[0].mxu0 %v676
        %v712 = vpop.f32.mrb[0].mxu0
        %v713 = vadd.f32 %v517, %v712
        %v714 = vpop.f32.mrb[0].mxu0
        %v715 = vpop.f32.mrb[0].mxu0
        %v716 = vadd.f32 %v520, %v715
        %v717 = vpop.f32.mrb[0].mxu0
        %718 = vdwg.mxu0
        %v719 = vmax.f32 %v713, 0.0
        %v720 = vmax.f32 %v716, 0.0
        %v721 = vpack.c.bf16 %v720, %v719
        %722 = vst.msk [vmem:[#allocation2 + $0x8] sm:$0xff] %vm624, %v721
        %v723 = vsel %vm668, inf, %v626
        %v724 = vsel %vm669, inf, %v627
        %v725 = vsel %vm523, %v723, inf
        %726 = vmin.xlane.f32.xlu0 %v725
        %v727 = vpop.xlane.xlu0 %726
        %v728 = vsel %vm523, %v724, inf
        %729 = vmin.xlane.f32.xlu0 %v728
        %v730 = vpop.xlane.xlu0 %729
        %vm731 = vcmp.le.f32.partialorder %v723, %v727
        %vm732 = vcmp.le.f32.partialorder %v724, %v730
        %v733 = vsel %vm731, %v462, 16
        %v734 = vsel %vm732, %v462, 16
        %v735 = vsel %vm523, %v733, 2147483647
        %v736 = vand.u32 %v735, 65535
        %v737 = vshra.s32 %v735, 16
        %v738 = vcvt.s32.f32 %v736
        %v739 = vcvt.s32.f32 %v737
        %740 = vmin.xlane.f32.xlu0 %v739
        %v741 = vpop.xlane.xlu0 %740
        %vm742 = vcmp.eq.f32.partialorder %v739, %v741
        %v743 = vsel %vm742, %v738, inf
        %744 = vmin.xlane.f32.xlu0 %v743
        %v745 = vpop.xlane.xlu0 %744
        %v746 = vcvt.f32.s32 %v745
        %v747 = vcvt.f32.s32 %v741
        %v748 = vshll.u32 %v747, 16
        %v749 = vadd.s32 %v748, %v746
        %v750 = vsel %vm523, %v734, 2147483647
        %v751 = vand.u32 %v750, 65535
        %v752 = vshra.s32 %v750, 16
        %v753 = vcvt.s32.f32 %v751
        %v754 = vcvt.s32.f32 %v752
        %755 = vmin.xlane.f32.xlu0 %v754
        %v756 = vpop.xlane.xlu0 %755
        %vm757 = vcmp.eq.f32.partialorder %v754, %v756
        %v758 = vsel %vm757, %v753, inf
        %759 = vmin.xlane.f32.xlu0 %v758
        %v760 = vpop.xlane.xlu0 %759
        %v761 = vcvt.f32.s32 %v760
        %v762 = vcvt.f32.s32 %v756
        %v763 = vshll.u32 %v762, 16
        %v764 = vadd.s32 %v763, %v761
        %vm765 = vcmp.eq.s32.totalorder %v733, %v749
        %vm766 = vcmp.eq.s32.totalorder %v734, %v764
        %v767 = vsel %vm765, 1, 0
        %v768 = vsel %vm766, 1, 0
        %v769 = vcvt.s32.f32 %v767
        %v770 = vcvt.s32.f32 %v768
        %v771 = vpack.c.bf16 %v770, %v769
        %v773 = vsel %vm523, %v771, 0
        %775 = vmatprep.subr.bf16.mxu0 0
        %776 = vmatpush1.bf16.msra.mxu0 %v575
        %777 = vmatprep.subr.bf16.mxu0 0
        %778 = vmatpush1.bf16.msra.mxu0 0
        %779 = vmatprep.subr.bf16.mxu0 0
        %780 = vmatpush1.bf16.msra.mxu0 0
        %781 = vmatprep.subr.bf16.mxu0 0
        %782 = vmatpush1.bf16.msra.mxu0 0
        %783 = vmatprep.subr.bf16.mxu0 0
        %784 = vmatpush1.bf16.msra.mxu0 0
        %785 = vmatprep.subr.bf16.mxu0 0
        %786 = vmatpush1.bf16.msra.mxu0 0
        %787 = vmatprep.subr.bf16.mxu0 0
        %788 = vmatpush1.bf16.msra.mxu0 0
        %789 = vmatprep.subr.bf16.mxu0 0
        %790 = vmatpush1.bf16.msra.mxu0 0
        %791 = vmatprep.subr.bf16.mxu0 0
        %792 = vmatpush1.bf16.msra.mxu0 0
        %793 = vmatprep.subr.bf16.mxu0 0
        %794 = vmatpush1.bf16.msra.mxu0 0
        %795 = vmatprep.subr.bf16.mxu0 0
        %796 = vmatpush1.bf16.msra.mxu0 0
        %797 = vmatprep.subr.bf16.mxu0 0
        %798 = vmatpush1.bf16.msra.mxu0 0
        %799 = vmatprep.subr.bf16.mxu0 0
        %800 = vmatpush1.bf16.msra.mxu0 0
        %801 = vmatprep.subr.bf16.mxu0 0
        %802 = vmatpush1.bf16.msra.mxu0 0
        %803 = vmatprep.subr.bf16.mxu0 0
        %804 = vmatpush1.bf16.msra.mxu0 0
        %805 = vmatprep.subr.bf16.mxu0 0
        %806 = vmatpush1.bf16.msra.mxu0 0
        %807 = vmatprep.mubr.bf16.mxu0 0
        %808 = vmatmul.mubr.bf16.gmra.mrb[0].mxu0 %v773
        %v809 = vpop.f32.mrb[0].mxu0
        %v810 = vadd.f32 %v517, %v809
        %v811 = vpop.f32.mrb[0].mxu0
        %v812 = vpop.f32.mrb[0].mxu0
        %v813 = vadd.f32 %v520, %v812
        %v814 = vpop.f32.mrb[0].mxu0
        %815 = vdwg.mxu0
        %v816 = vmax.f32 %v810, 0.0
        %v817 = vmax.f32 %v813, 0.0
        %v818 = vpack.c.bf16 %v817, %v816
        %819 = vst.msk [vmem:[#allocation2 + $0x10] sm:$0xff] %vm624, %v818
        %v820 = vsel %vm765, inf, %v723
        %v821 = vsel %vm766, inf, %v724
        %v822 = vsel %vm523, %v820, inf
        %823 = vmin.xlane.f32.xlu0 %v822
        %v824 = vpop.xlane.xlu0 %823
        %v825 = vsel %vm523, %v821, inf
        %826 = vmin.xlane.f32.xlu0 %v825
        %v827 = vpop.xlane.xlu0 %826
        %vm828 = vcmp.le.f32.partialorder %v820, %v824
        %vm829 = vcmp.le.f32.partialorder %v821, %v827
        %v830 = vsel %vm828, %v462, 16
        %v831 = vsel %vm829, %v462, 16
        %v832 = vsel %vm523, %v830, 2147483647
        %v833 = vand.u32 %v832, 65535
        %v834 = vshra.s32 %v832, 16
        %v835 = vcvt.s32.f32 %v833
        %v836 = vcvt.s32.f32 %v834
        %837 = vmin.xlane.f32.xlu0 %v836
        %v838 = vpop.xlane.xlu0 %837
        %vm839 = vcmp.eq.f32.partialorder %v836, %v838
        %v840 = vsel %vm839, %v835, inf
        %841 = vmin.xlane.f32.xlu0 %v840
        %v842 = vpop.xlane.xlu0 %841
        %v843 = vcvt.f32.s32 %v842
        %v844 = vcvt.f32.s32 %v838
        %v845 = vshll.u32 %v844, 16
        %v846 = vadd.s32 %v845, %v843
        %v847 = vsel %vm523, %v831, 2147483647
        %v848 = vand.u32 %v847, 65535
        %v849 = vshra.s32 %v847, 16
        %v850 = vcvt.s32.f32 %v848
        %v851 = vcvt.s32.f32 %v849
        %852 = vmin.xlane.f32.xlu0 %v851
        %v853 = vpop.xlane.xlu0 %852
        %vm854 = vcmp.eq.f32.partialorder %v851, %v853
        %v855 = vsel %vm854, %v850, inf
        %856 = vmin.xlane.f32.xlu0 %v855
        %v857 = vpop.xlane.xlu0 %856
        %v858 = vcvt.f32.s32 %v857
        %v859 = vcvt.f32.s32 %v853
        %v860 = vshll.u32 %v859, 16
        %v861 = vadd.s32 %v860, %v858
        %vm862 = vcmp.eq.s32.totalorder %v830, %v846
        %vm863 = vcmp.eq.s32.totalorder %v831, %v861
        %v864 = vsel %vm862, 1, 0
        %v865 = vsel %vm863, 1, 0
        %v866 = vcvt.s32.f32 %v864
        %v867 = vcvt.s32.f32 %v865
        %v868 = vpack.c.bf16 %v867, %v866
        %v870 = vsel %vm523, %v868, 0
        %872 = vmatprep.subr.bf16.mxu0 0
        %873 = vmatpush1.bf16.msra.mxu0 %v575
        %874 = vmatprep.subr.bf16.mxu0 0
        %875 = vmatpush1.bf16.msra.mxu0 0
        %876 = vmatprep.subr.bf16.mxu0 0
        %877 = vmatpush1.bf16.msra.mxu0 0
        %878 = vmatprep.subr.bf16.mxu0 0
        %879 = vmatpush1.bf16.msra.mxu0 0
        %880 = vmatprep.subr.bf16.mxu0 0
        %881 = vmatpush1.bf16.msra.mxu0 0
        %882 = vmatprep.subr.bf16.mxu0 0
        %883 = vmatpush1.bf16.msra.mxu0 0
        %884 = vmatprep.subr.bf16.mxu0 0
        %885 = vmatpush1.bf16.msra.mxu0 0
        %886 = vmatprep.subr.bf16.mxu0 0
        %887 = vmatpush1.bf16.msra.mxu0 0
        %888 = vmatprep.subr.bf16.mxu0 0
        %889 = vmatpush1.bf16.msra.mxu0 0
        %890 = vmatprep.subr.bf16.mxu0 0
        %891 = vmatpush1.bf16.msra.mxu0 0
        %892 = vmatprep.subr.bf16.mxu0 0
        %893 = vmatpush1.bf16.msra.mxu0 0
        %894 = vmatprep.subr.bf16.mxu0 0
        %895 = vmatpush1.bf16.msra.mxu0 0
        %896 = vmatprep.subr.bf16.mxu0 0
        %897 = vmatpush1.bf16.msra.mxu0 0
        %898 = vmatprep.subr.bf16.mxu0 0
        %899 = vmatpush1.bf16.msra.mxu0 0
        %900 = vmatprep.subr.bf16.mxu0 0
        %901 = vmatpush1.bf16.msra.mxu0 0
        %902 = vmatprep.subr.bf16.mxu0 0
        %903 = vmatpush1.bf16.msra.mxu0 0
        %904 = vmatprep.mubr.bf16.mxu0 0
        %905 = vmatmul.mubr.bf16.gmra.mrb[0].mxu0 %v870
        %v906 = vpop.f32.mrb[0].mxu0
        %v907 = vadd.f32 %v517, %v906
        %v908 = vpop.f32.mrb[0].mxu0
        %v909 = vpop.f32.mrb[0].mxu0
        %v910 = vadd.f32 %v520, %v909
        %v911 = vpop.f32.mrb[0].mxu0
        %912 = vdwg.mxu0
        %v913 = vmax.f32 %v907, 0.0
        %v914 = vmax.f32 %v910, 0.0
        %v915 = vpack.c.bf16 %v914, %v913
        %916 = vst.msk [vmem:[#allocation2 + $0x18] sm:$0xff] %vm624, %v915
        %v917 = vsel %vm862, inf, %v820
        %v918 = vsel %vm863, inf, %v821
        %v919 = vsel %vm523, %v917, inf
        %920 = vmin.xlane.f32.xlu0 %v919
        %v921 = vpop.xlane.xlu0 %920
        %v922 = vsel %vm523, %v918, inf
        %923 = vmin.xlane.f32.xlu0 %v922
        %v924 = vpop.xlane.xlu0 %923
        %vm925 = vcmp.le.f32.partialorder %v917, %v921
        %vm926 = vcmp.le.f32.partialorder %v918, %v924
        %v927 = vsel %vm925, %v462, 16
        %v928 = vsel %vm926, %v462, 16
        %v929 = vsel %vm523, %v927, 2147483647
        %v930 = vand.u32 %v929, 65535
        %v931 = vshra.s32 %v929, 16
        %v932 = vcvt.s32.f32 %v930
        %v933 = vcvt.s32.f32 %v931
        %934 = vmin.xlane.f32.xlu0 %v933
        %v935 = vpop.xlane.xlu0 %934
        %vm936 = vcmp.eq.f32.partialorder %v933, %v935
        %v937 = vsel %vm936, %v932, inf
        %938 = vmin.xlane.f32.xlu0 %v937
        %v939 = vpop.xlane.xlu0 %938
        %v940 = vcvt.f32.s32 %v939
        %v941 = vcvt.f32.s32 %v935
        %v942 = vshll.u32 %v941, 16
        %v943 = vadd.s32 %v942, %v940
        %v944 = vsel %vm523, %v928, 2147483647
        %v945 = vand.u32 %v944, 65535
        %v946 = vshra.s32 %v944, 16
        %v947 = vcvt.s32.f32 %v945
        %v948 = vcvt.s32.f32 %v946
        %949 = vmin.xlane.f32.xlu0 %v948
        %v950 = vpop.xlane.xlu0 %949
        %vm951 = vcmp.eq.f32.partialorder %v948, %v950
        %v952 = vsel %vm951, %v947, inf
        %953 = vmin.xlane.f32.xlu0 %v952
        %v954 = vpop.xlane.xlu0 %953
        %v955 = vcvt.f32.s32 %v954
        %v956 = vcvt.f32.s32 %v950
        %v957 = vshll.u32 %v956, 16
        %v958 = vadd.s32 %v957, %v955
        %vm959 = vcmp.eq.s32.totalorder %v927, %v943
        %vm960 = vcmp.eq.s32.totalorder %v928, %v958
        %v961 = vsel %vm959, 1, 0
        %v962 = vsel %vm960, 1, 0
        %v963 = vcvt.s32.f32 %v961
        %v964 = vcvt.s32.f32 %v962
        %v965 = vpack.c.bf16 %v964, %v963
        %v967 = vsel %vm523, %v965, 0
        %969 = vmatprep.subr.bf16.mxu0 0
        %970 = vmatpush1.bf16.msra.mxu0 %v575
        %971 = vmatprep.subr.bf16.mxu0 0
        %972 = vmatpush1.bf16.msra.mxu0 0
        %973 = vmatprep.subr.bf16.mxu0 0
        %974 = vmatpush1.bf16.msra.mxu0 0
        %975 = vmatprep.subr.bf16.mxu0 0
        %976 = vmatpush1.bf16.msra.mxu0 0
        %977 = vmatprep.subr.bf16.mxu0 0
        %978 = vmatpush1.bf16.msra.mxu0 0
        %979 = vmatprep.subr.bf16.mxu0 0
        %980 = vmatpush1.bf16.msra.mxu0 0
        %981 = vmatprep.subr.bf16.mxu0 0
        %982 = vmatpush1.bf16.msra.mxu0 0
        %983 = vmatprep.subr.bf16.mxu0 0
        %984 = vmatpush1.bf16.msra.mxu0 0
        %985 = vmatprep.subr.bf16.mxu0 0
        %986 = vmatpush1.bf16.msra.mxu0 0
        %987 = vmatprep.subr.bf16.mxu0 0
        %988 = vmatpush1.bf16.msra.mxu0 0
        %989 = vmatprep.subr.bf16.mxu0 0
        %990 = vmatpush1.bf16.msra.mxu0 0
        %991 = vmatprep.subr.bf16.mxu0 0
        %992 = vmatpush1.bf16.msra.mxu0 0
        %993 = vmatprep.subr.bf16.mxu0 0
        %994 = vmatpush1.bf16.msra.mxu0 0
        %995 = vmatprep.subr.bf16.mxu0 0
        %996 = vmatpush1.bf16.msra.mxu0 0
        %997 = vmatprep.subr.bf16.mxu0 0
        %998 = vmatpush1.bf16.msra.mxu0 0
        %999 = vmatprep.subr.bf16.mxu0 0
        %1000 = vmatpush1.bf16.msra.mxu0 0
        %1001 = vmatprep.mubr.bf16.mxu0 0
        %1002 = vmatmul.mubr.bf16.gmra.mrb[0].mxu0 %v967
        %v1003 = vpop.f32.mrb[0].mxu0
        %v1004 = vadd.f32 %v517, %v1003
        %v1005 = vpop.f32.mrb[0].mxu0
        %v1006 = vpop.f32.mrb[0].mxu0
        %v1007 = vadd.f32 %v520, %v1006
        %v1008 = vpop.f32.mrb[0].mxu0
        %1009 = vdwg.mxu0
        %v1010 = vmax.f32 %v1004, 0.0
        %v1011 = vmax.f32 %v1007, 0.0
        %v1012 = vpack.c.bf16 %v1011, %v1010
        %1013 = vst.msk [vmem:[#allocation2 + $0x20] sm:$0xff] %vm624, %v1012
        %v1014 = vsel %vm959, inf, %v917
        %v1015 = vsel %vm960, inf, %v918
        %v1016 = vsel %vm523, %v1014, inf
        %1017 = vmin.xlane.f32.xlu0 %v1016
        %v1018 = vpop.xlane.xlu0 %1017
        %v1019 = vsel %vm523, %v1015, inf
        %1020 = vmin.xlane.f32.xlu0 %v1019
        %v1021 = vpop.xlane.xlu0 %1020
        %vm1022 = vcmp.le.f32.partialorder %v1014, %v1018
        %vm1023 = vcmp.le.f32.partialorder %v1015, %v1021
        %v1024 = vsel %vm1022, %v462, 16
        %v1025 = vsel %vm1023, %v462, 16
        %v1026 = vsel %vm523, %v1024, 2147483647
        %v1027 = vand.u32 %v1026, 65535
        %v1028 = vshra.s32 %v1026, 16
        %v1029 = vcvt.s32.f32 %v1027
        %v1030 = vcvt.s32.f32 %v1028
        %1031 = vmin.xlane.f32.xlu0 %v1030
        %v1032 = vpop.xlane.xlu0 %1031
        %vm1033 = vcmp.eq.f32.partialorder %v1030, %v1032
        %v1034 = vsel %vm1033, %v1029, inf
        %1035 = vmin.xlane.f32.xlu0 %v1034
        %v1036 = vpop.xlane.xlu0 %1035
        %v1037 = vcvt.f32.s32 %v1036
        %v1038 = vcvt.f32.s32 %v1032
        %v1039 = vshll.u32 %v1038, 16
        %v1040 = vadd.s32 %v1039, %v1037
        %v1041 = vsel %vm523, %v1025, 2147483647
        %v1042 = vand.u32 %v1041, 65535
        %v1043 = vshra.s32 %v1041, 16
        %v1044 = vcvt.s32.f32 %v1042
        %v1045 = vcvt.s32.f32 %v1043
        %1046 = vmin.xlane.f32.xlu0 %v1045
        %v1047 = vpop.xlane.xlu0 %1046
        %vm1048 = vcmp.eq.f32.partialorder %v1045, %v1047
        %v1049 = vsel %vm1048, %v1044, inf
        %1050 = vmin.xlane.f32.xlu0 %v1049
        %v1051 = vpop.xlane.xlu0 %1050
        %v1052 = vcvt.f32.s32 %v1051
        %v1053 = vcvt.f32.s32 %v1047
        %v1054 = vshll.u32 %v1053, 16
        %v1055 = vadd.s32 %v1054, %v1052
        %vm1056 = vcmp.eq.s32.totalorder %v1024, %v1040
        %vm1057 = vcmp.eq.s32.totalorder %v1025, %v1055
        %v1058 = vsel %vm1056, 1, 0
        %v1059 = vsel %vm1057, 1, 0
        %v1060 = vcvt.s32.f32 %v1058
        %v1061 = vcvt.s32.f32 %v1059
        %v1062 = vpack.c.bf16 %v1061, %v1060
        %v1064 = vsel %vm523, %v1062, 0
        %1066 = vmatprep.subr.bf16.mxu0 0
        %1067 = vmatpush1.bf16.msra.mxu0 %v575
        %1068 = vmatprep.subr.bf16.mxu0 0
        %1069 = vmatpush1.bf16.msra.mxu0 0
        %1070 = vmatprep.subr.bf16.mxu0 0
        %1071 = vmatpush1.bf16.msra.mxu0 0
        %1072 = vmatprep.subr.bf16.mxu0 0
        %1073 = vmatpush1.bf16.msra.mxu0 0
        %1074 = vmatprep.subr.bf16.mxu0 0
        %1075 = vmatpush1.bf16.msra.mxu0 0
        %1076 = vmatprep.subr.bf16.mxu0 0
        %1077 = vmatpush1.bf16.msra.mxu0 0
        %1078 = vmatprep.subr.bf16.mxu0 0
        %1079 = vmatpush1.bf16.msra.mxu0 0
        %1080 = vmatprep.subr.bf16.mxu0 0
        %1081 = vmatpush1.bf16.msra.mxu0 0
        %1082 = vmatprep.subr.bf16.mxu0 0
        %1083 = vmatpush1.bf16.msra.mxu0 0
        %1084 = vmatprep.subr.bf16.mxu0 0
        %1085 = vmatpush1.bf16.msra.mxu0 0
        %1086 = vmatprep.subr.bf16.mxu0 0
        %1087 = vmatpush1.bf16.msra.mxu0 0
        %1088 = vmatprep.subr.bf16.mxu0 0
        %1089 = vmatpush1.bf16.msra.mxu0 0
        %1090 = vmatprep.subr.bf16.mxu0 0
        %1091 = vmatpush1.bf16.msra.mxu0 0
        %1092 = vmatprep.subr.bf16.mxu0 0
        %1093 = vmatpush1.bf16.msra.mxu0 0
        %1094 = vmatprep.subr.bf16.mxu0 0
        %1095 = vmatpush1.bf16.msra.mxu0 0
        %1096 = vmatprep.subr.bf16.mxu0 0
        %1097 = vmatpush1.bf16.msra.mxu0 0
        %1098 = vmatprep.mubr.bf16.mxu0 0
        %1099 = vmatmul.mubr.bf16.gmra.mrb[0].mxu0 %v1064
        %v1100 = vpop.f32.mrb[0].mxu0
        %v1101 = vadd.f32 %v517, %v1100
        %v1102 = vpop.f32.mrb[0].mxu0
        %v1103 = vpop.f32.mrb[0].mxu0
        %v1104 = vadd.f32 %v520, %v1103
        %v1105 = vpop.f32.mrb[0].mxu0
        %1106 = vdwg.mxu0
        %v1107 = vmax.f32 %v1101, 0.0
        %v1108 = vmax.f32 %v1104, 0.0
        %v1109 = vpack.c.bf16 %v1108, %v1107
        %1110 = vst.msk [vmem:[#allocation2 + $0x28] sm:$0xff] %vm624, %v1109
        %v1111 = vsel %vm1056, inf, %v1014
        %v1112 = vsel %vm1057, inf, %v1015
        %v1113 = vsel %vm523, %v1111, inf
        %1114 = vmin.xlane.f32.xlu0 %v1113
        %v1115 = vpop.xlane.xlu0 %1114
        %v1116 = vsel %vm523, %v1112, inf
        %1117 = vmin.xlane.f32.xlu0 %v1116
        %v1118 = vpop.xlane.xlu0 %1117
        %vm1119 = vcmp.le.f32.partialorder %v1111, %v1115
        %vm1120 = vcmp.le.f32.partialorder %v1112, %v1118
        %v1121 = vsel %vm1119, %v462, 16
        %v1122 = vsel %vm1120, %v462, 16
        %v1123 = vsel %vm523, %v1121, 2147483647
        %v1124 = vand.u32 %v1123, 65535
        %v1125 = vshra.s32 %v1123, 16
        %v1126 = vcvt.s32.f32 %v1124
        %v1127 = vcvt.s32.f32 %v1125
        %1128 = vmin.xlane.f32.xlu0 %v1127
        %v1129 = vpop.xlane.xlu0 %1128
        %vm1130 = vcmp.eq.f32.partialorder %v1127, %v1129
        %v1131 = vsel %vm1130, %v1126, inf
        %1132 = vmin.xlane.f32.xlu0 %v1131
        %v1133 = vpop.xlane.xlu0 %1132
        %v1134 = vcvt.f32.s32 %v1133
        %v1135 = vcvt.f32.s32 %v1129
        %v1136 = vshll.u32 %v1135, 16
        %v1137 = vadd.s32 %v1136, %v1134
        %v1138 = vsel %vm523, %v1122, 2147483647
        %v1139 = vand.u32 %v1138, 65535
        %v1140 = vshra.s32 %v1138, 16
        %v1141 = vcvt.s32.f32 %v1139
        %v1142 = vcvt.s32.f32 %v1140
        %1143 = vmin.xlane.f32.xlu0 %v1142
        %v1144 = vpop.xlane.xlu0 %1143
        %vm1145 = vcmp.eq.f32.partialorder %v1142, %v1144
        %v1146 = vsel %vm1145, %v1141, inf
        %1147 = vmin.xlane.f32.xlu0 %v1146
        %v1148 = vpop.xlane.xlu0 %1147
        %v1149 = vcvt.f32.s32 %v1148
        %v1150 = vcvt.f32.s32 %v1144
        %v1151 = vshll.u32 %v1150, 16
        %v1152 = vadd.s32 %v1151, %v1149
        %vm1153 = vcmp.eq.s32.totalorder %v1121, %v1137
        %vm1154 = vcmp.eq.s32.totalorder %v1122, %v1152
        %v1155 = vsel %vm1153, 1, 0
        %v1156 = vsel %vm1154, 1, 0
        %v1157 = vcvt.s32.f32 %v1155
        %v1158 = vcvt.s32.f32 %v1156
        %v1159 = vpack.c.bf16 %v1158, %v1157
        %v1161 = vsel %vm523, %v1159, 0
        %1163 = vmatprep.subr.bf16.mxu0 0
        %1164 = vmatpush1.bf16.msra.mxu0 %v575
        %1165 = vmatprep.subr.bf16.mxu0 0
        %1166 = vmatpush1.bf16.msra.mxu0 0
        %1167 = vmatprep.subr.bf16.mxu0 0
        %1168 = vmatpush1.bf16.msra.mxu0 0
        %1169 = vmatprep.subr.bf16.mxu0 0
        %1170 = vmatpush1.bf16.msra.mxu0 0
        %1171 = vmatprep.subr.bf16.mxu0 0
        %1172 = vmatpush1.bf16.msra.mxu0 0
        %1173 = vmatprep.subr.bf16.mxu0 0
        %1174 = vmatpush1.bf16.msra.mxu0 0
        %1175 = vmatprep.subr.bf16.mxu0 0
        %1176 = vmatpush1.bf16.msra.mxu0 0
        %1177 = vmatprep.subr.bf16.mxu0 0
        %1178 = vmatpush1.bf16.msra.mxu0 0
        %1179 = vmatprep.subr.bf16.mxu0 0
        %1180 = vmatpush1.bf16.msra.mxu0 0
        %1181 = vmatprep.subr.bf16.mxu0 0
        %1182 = vmatpush1.bf16.msra.mxu0 0
        %1183 = vmatprep.subr.bf16.mxu0 0
        %1184 = vmatpush1.bf16.msra.mxu0 0
        %1185 = vmatprep.subr.bf16.mxu0 0
        %1186 = vmatpush1.bf16.msra.mxu0 0
        %1187 = vmatprep.subr.bf16.mxu0 0
        %1188 = vmatpush1.bf16.msra.mxu0 0
        %1189 = vmatprep.subr.bf16.mxu0 0
        %1190 = vmatpush1.bf16.msra.mxu0 0
        %1191 = vmatprep.subr.bf16.mxu0 0
        %1192 = vmatpush1.bf16.msra.mxu0 0
        %1193 = vmatprep.subr.bf16.mxu0 0
        %1194 = vmatpush1.bf16.msra.mxu0 0
        %1195 = vmatprep.mubr.bf16.mxu0 0
        %1196 = vmatmul.mubr.bf16.gmra.mrb[0].mxu0 %v1161
        %v1197 = vpop.f32.mrb[0].mxu0
        %v1198 = vadd.f32 %v517, %v1197
        %v1199 = vpop.f32.mrb[0].mxu0
        %v1200 = vpop.f32.mrb[0].mxu0
        %v1201 = vadd.f32 %v520, %v1200
        %v1202 = vpop.f32.mrb[0].mxu0
        %1203 = vdwg.mxu0
        %v1204 = vmax.f32 %v1198, 0.0
        %v1205 = vmax.f32 %v1201, 0.0
        %v1206 = vpack.c.bf16 %v1205, %v1204
        %1207 = vst.msk [vmem:[#allocation2 + $0x30] sm:$0xff] %vm624, %v1206
        %v1208 = vsel %vm1153, inf, %v1111
        %v1209 = vsel %vm1154, inf, %v1112
        %v1210 = vsel %vm523, %v1208, inf
        %1211 = vmin.xlane.f32.xlu0 %v1210
        %v1212 = vpop.xlane.xlu0 %1211
        %v1213 = vsel %vm523, %v1209, inf
        %1214 = vmin.xlane.f32.xlu0 %v1213
        %v1215 = vpop.xlane.xlu0 %1214
        %vm1216 = vcmp.le.f32.partialorder %v1208, %v1212
        %vm1217 = vcmp.le.f32.partialorder %v1209, %v1215
        %v1218 = vsel %vm1216, %v462, 16
        %v1219 = vsel %vm1217, %v462, 16
        %v1220 = vsel %vm523, %v1218, 2147483647
        %v1221 = vand.u32 %v1220, 65535
        %v1222 = vshra.s32 %v1220, 16
        %v1223 = vcvt.s32.f32 %v1221
        %v1224 = vcvt.s32.f32 %v1222
        %1225 = vmin.xlane.f32.xlu0 %v1224
        %v1226 = vpop.xlane.xlu0 %1225
        %vm1227 = vcmp.eq.f32.partialorder %v1224, %v1226
        %v1228 = vsel %vm1227, %v1223, inf
        %1229 = vmin.xlane.f32.xlu0 %v1228
        %v1230 = vpop.xlane.xlu0 %1229
        %v1231 = vcvt.f32.s32 %v1230
        %v1232 = vcvt.f32.s32 %v1226
        %v1233 = vshll.u32 %v1232, 16
        %v1234 = vadd.s32 %v1233, %v1231
        %v1235 = vsel %vm523, %v1219, 2147483647
        %v1236 = vand.u32 %v1235, 65535
        %v1237 = vshra.s32 %v1235, 16
        %v1238 = vcvt.s32.f32 %v1236
        %v1239 = vcvt.s32.f32 %v1237
        %1240 = vmin.xlane.f32.xlu0 %v1239
        %v1241 = vpop.xlane.xlu0 %1240
        %vm1242 = vcmp.eq.f32.partialorder %v1239, %v1241
        %v1243 = vsel %vm1242, %v1238, inf
        %1244 = vmin.xlane.f32.xlu0 %v1243
        %v1245 = vpop.xlane.xlu0 %1244
        %v1246 = vcvt.f32.s32 %v1245
        %v1247 = vcvt.f32.s32 %v1241
        %v1248 = vshll.u32 %v1247, 16
        %v1249 = vadd.s32 %v1248, %v1246
        %vm1250 = vcmp.eq.s32.totalorder %v1218, %v1234
        %vm1251 = vcmp.eq.s32.totalorder %v1219, %v1249
        %v1252 = vsel %vm1250, 1, 0
        %v1253 = vsel %vm1251, 1, 0
        %v1254 = vcvt.s32.f32 %v1252
        %v1255 = vcvt.s32.f32 %v1253
        %v1256 = vpack.c.bf16 %v1255, %v1254
        %v1258 = vsel %vm523, %v1256, 0
        %1260 = vmatprep.subr.bf16.mxu0 0
        %1261 = vmatpush1.bf16.msra.mxu0 %v575
        %1262 = vmatprep.subr.bf16.mxu0 0
        %1263 = vmatpush1.bf16.msra.mxu0 0
        %1264 = vmatprep.subr.bf16.mxu0 0
        %1265 = vmatpush1.bf16.msra.mxu0 0
        %1266 = vmatprep.subr.bf16.mxu0 0
        %1267 = vmatpush1.bf16.msra.mxu0 0
        %1268 = vmatprep.subr.bf16.mxu0 0
        %1269 = vmatpush1.bf16.msra.mxu0 0
        %1270 = vmatprep.subr.bf16.mxu0 0
        %1271 = vmatpush1.bf16.msra.mxu0 0
        %1272 = vmatprep.subr.bf16.mxu0 0
        %1273 = vmatpush1.bf16.msra.mxu0 0
        %1274 = vmatprep.subr.bf16.mxu0 0
        %1275 = vmatpush1.bf16.msra.mxu0 0
        %1276 = vmatprep.subr.bf16.mxu0 0
        %1277 = vmatpush1.bf16.msra.mxu0 0
        %1278 = vmatprep.subr.bf16.mxu0 0
        %1279 = vmatpush1.bf16.msra.mxu0 0
        %1280 = vmatprep.subr.bf16.mxu0 0
        %1281 = vmatpush1.bf16.msra.mxu0 0
        %1282 = vmatprep.subr.bf16.mxu0 0
        %1283 = vmatpush1.bf16.msra.mxu0 0
        %1284 = vmatprep.subr.bf16.mxu0 0
        %1285 = vmatpush1.bf16.msra.mxu0 0
        %1286 = vmatprep.subr.bf16.mxu0 0
        %1287 = vmatpush1.bf16.msra.mxu0 0
        %1288 = vmatprep.subr.bf16.mxu0 0
        %1289 = vmatpush1.bf16.msra.mxu0 0
        %1290 = vmatprep.subr.bf16.mxu0 0
        %1291 = vmatpush1.bf16.msra.mxu0 0
        %1292 = vmatprep.mubr.bf16.mxu0 0
        %1293 = vmatmul.mubr.bf16.gmra.mrb[0].mxu0 %v1258
        %v1294 = vpop.f32.mrb[0].mxu0
        %v1295 = vadd.f32 %v517, %v1294
        %v1296 = vpop.f32.mrb[0].mxu0
        %v1297 = vpop.f32.mrb[0].mxu0
        %v1298 = vadd.f32 %v520, %v1297
        %v1299 = vpop.f32.mrb[0].mxu0
        %1300 = vdwg.mxu0
        %v1301 = vmax.f32 %v1295, 0.0
        %v1302 = vmax.f32 %v1298, 0.0
        %v1303 = vpack.c.bf16 %v1302, %v1301
        %1304 = vst.msk [vmem:[#allocation2 + $0x38] sm:$0xff] %vm624, %v1303
        %v1305 = vld [vmem:[#allocation2] sm:$0xff]
        %v1306 = vld [vmem:[#allocation2 + $0x8] sm:$0xff]
        %v1307 = vld [vmem:[#allocation2 + $0x10] sm:$0xff]
        %v1308 = vld [vmem:[#allocation2 + $0x18] sm:$0xff]
        %v1309 = vld [vmem:[#allocation2 + $0x20] sm:$0xff]
        %v1310 = vld [vmem:[#allocation2 + $0x28] sm:$0xff]
        %v1311 = vld [vmem:[#allocation2 + $0x30] sm:$0xff]
        %v1312 = vld [vmem:[#allocation2 + $0x38] sm:$0xff]
        %v1313 = vld [vmem:[%s6] sm:$0xf]
        %v1314 = vld [vmem:[%s6 + $0x4] sm:$0xf]
        %v1315 = vld [vmem:[%s6 + $0x8] sm:$0xf]
        %v1316 = vld [vmem:[%s6 + $0xc] sm:$0xf]
        %v1317 = vld [vmem:[%s7] sm:$0x1]
        %v1319 = vlaneseq
        %v1320 = vshrl.u32 %v1319, 7
        %v1321 = vsub.s32 0, %v1320
        %v1322 = vrot.slane %v1317, %v1321
        %v1328 = vunpack.c.l.b16 %v1313
        %v1329 = vunpack.c.l.b16 %v1314
        %v1330 = vunpack.c.l.b16 %v1315
        %v1331 = vunpack.c.l.b16 %v1316
        %v1332 = vpack.c.b16 %v1329, %v1328
        %v1333 = vpack.c.b16 %v1331, %v1330
        %v1337 = vsel %vm624, %v1305, 0
        %v1340 = vsel %vm624, %v1306, 0
        %v1343 = vsel %vm624, %v1307, 0
        %v1346 = vsel %vm624, %v1308, 0
        %v1349 = vsel %vm624, %v1309, 0
        %v1352 = vsel %vm624, %v1310, 0
        %v1355 = vsel %vm624, %v1311, 0
        %v1358 = vsel %vm624, %v1312, 0
        %1360 = vmatprep.subr.bf16.mxu0 0
        %1361 = vmatpush1.bf16.msra.mxu0 %v1332
        %1362 = vmatprep.subr.bf16.mxu0 0
        %1363 = vmatpush1.bf16.msra.mxu0 %v1333
        %1364 = vmatprep.subr.bf16.mxu0 0
        %1365 = vmatpush1.bf16.msra.mxu0 0
        %1366 = vmatprep.subr.bf16.mxu0 0
        %1367 = vmatpush1.bf16.msra.mxu0 0
        %1368 = vmatprep.subr.bf16.mxu0 0
        %1369 = vmatpush1.bf16.msra.mxu0 0
        %1370 = vmatprep.subr.bf16.mxu0 0
        %1371 = vmatpush1.bf16.msra.mxu0 0
        %1372 = vmatprep.subr.bf16.mxu0 0
        %1373 = vmatpush1.bf16.msra.mxu0 0
        %1374 = vmatprep.subr.bf16.mxu0 0
        %1375 = vmatpush1.bf16.msra.mxu0 0
        %1376 = vmatprep.subr.bf16.mxu0 0
        %1377 = vmatpush1.bf16.msra.mxu0 0
        %1378 = vmatprep.subr.bf16.mxu0 0
        %1379 = vmatpush1.bf16.msra.mxu0 0
        %1380 = vmatprep.subr.bf16.mxu0 0
        %1381 = vmatpush1.bf16.msra.mxu0 0
        %1382 = vmatprep.subr.bf16.mxu0 0
        %1383 = vmatpush1.bf16.msra.mxu0 0
        %1384 = vmatprep.subr.bf16.mxu0 0
        %1385 = vmatpush1.bf16.msra.mxu0 0
        %1386 = vmatprep.subr.bf16.mxu0 0
        %1387 = vmatpush1.bf16.msra.mxu0 0
        %1388 = vmatprep.subr.bf16.mxu0 0
        %1389 = vmatpush1.bf16.msra.mxu0 0
        %1390 = vmatprep.subr.bf16.mxu0 0
        %1391 = vmatpush1.bf16.msra.mxu0 0
        %1392 = vmatprep.mubr.bf16.mxu0 0
        %1393 = vmatmul.mubr.bf16.gmra.mrb[0].mxu0 %v1337
        %v1394 = vpop.f32.mrb[0].mxu0
        %v1395 = vadd.f32 %v1322, %v1394
        %v1396 = vpop.f32.mrb[0].mxu0
        %v1397 = vpop.f32.mrb[0].mxu0
        %v1398 = vadd.f32 %v1322, %v1397
        %v1399 = vpop.f32.mrb[0].mxu0
        %1400 = vmatprep.mubr.bf16.mxu0 0
        %1401 = vmatmul.mubr.bf16.gmra.mrb[0].mxu0 %v1340
        %v1402 = vpop.f32.mrb[0].mxu0
        %v1403 = vadd.f32 %v1322, %v1402
        %v1404 = vpop.f32.mrb[0].mxu0
        %v1405 = vpop.f32.mrb[0].mxu0
        %v1406 = vadd.f32 %v1322, %v1405
        %v1407 = vpop.f32.mrb[0].mxu0
        %1408 = vmatprep.mubr.bf16.mxu0 0
        %1409 = vmatmul.mubr.bf16.gmra.mrb[0].mxu0 %v1343
        %v1410 = vpop.f32.mrb[0].mxu0
        %v1411 = vadd.f32 %v1322, %v1410
        %v1412 = vpop.f32.mrb[0].mxu0
        %v1413 = vpop.f32.mrb[0].mxu0
        %v1414 = vadd.f32 %v1322, %v1413
        %v1415 = vpop.f32.mrb[0].mxu0
        %1416 = vmatprep.mubr.bf16.mxu0 0
        %1417 = vmatmul.mubr.bf16.gmra.mrb[0].mxu0 %v1346
        %v1418 = vpop.f32.mrb[0].mxu0
        %v1419 = vadd.f32 %v1322, %v1418
        %v1420 = vpop.f32.mrb[0].mxu0
        %v1421 = vpop.f32.mrb[0].mxu0
        %v1422 = vadd.f32 %v1322, %v1421
        %v1423 = vpop.f32.mrb[0].mxu0
        %1424 = vmatprep.mubr.bf16.mxu0 0
        %1425 = vmatmul.mubr.bf16.gmra.mrb[0].mxu0 %v1349
        %v1426 = vpop.f32.mrb[0].mxu0
        %v1427 = vadd.f32 %v1322, %v1426
        %v1428 = vpop.f32.mrb[0].mxu0
        %v1429 = vpop.f32.mrb[0].mxu0
        %v1430 = vadd.f32 %v1322, %v1429
        %v1431 = vpop.f32.mrb[0].mxu0
        %1432 = vmatprep.mubr.bf16.mxu0 0
        %1433 = vmatmul.mubr.bf16.gmra.mrb[0].mxu0 %v1352
        %v1434 = vpop.f32.mrb[0].mxu0
        %v1435 = vadd.f32 %v1322, %v1434
        %v1436 = vpop.f32.mrb[0].mxu0
        %v1437 = vpop.f32.mrb[0].mxu0
        %v1438 = vadd.f32 %v1322, %v1437
        %v1439 = vpop.f32.mrb[0].mxu0
        %1440 = vmatprep.mubr.bf16.mxu0 0
        %1441 = vmatmul.mubr.bf16.gmra.mrb[0].mxu0 %v1355
        %v1442 = vpop.f32.mrb[0].mxu0
        %v1443 = vadd.f32 %v1322, %v1442
        %v1444 = vpop.f32.mrb[0].mxu0
        %v1445 = vpop.f32.mrb[0].mxu0
        %v1446 = vadd.f32 %v1322, %v1445
        %v1447 = vpop.f32.mrb[0].mxu0
        %1448 = vmatprep.mubr.bf16.mxu0 0
        %1449 = vmatmul.mubr.bf16.gmra.mrb[0].mxu0 %v1358
        %v1450 = vpop.f32.mrb[0].mxu0
        %v1451 = vadd.f32 %v1322, %v1450
        %v1452 = vpop.f32.mrb[0].mxu0
        %v1453 = vpop.f32.mrb[0].mxu0
        %v1454 = vadd.f32 %v1322, %v1453
        %v1455 = vpop.f32.mrb[0].mxu0
        %1456 = vdwg.mxu0
        %v1457 = vmax.f32 %v1395, 0.0
        %v1458 = vmax.f32 %v1398, 0.0
        %v1459 = vmax.f32 %v1403, 0.0
        %v1460 = vmax.f32 %v1406, 0.0
        %v1461 = vmax.f32 %v1411, 0.0
        %v1462 = vmax.f32 %v1414, 0.0
        %v1463 = vmax.f32 %v1419, 0.0
        %v1464 = vmax.f32 %v1422, 0.0
        %v1465 = vmax.f32 %v1427, 0.0
        %v1466 = vmax.f32 %v1430, 0.0
        %v1467 = vmax.f32 %v1435, 0.0
        %v1468 = vmax.f32 %v1438, 0.0
        %v1469 = vmax.f32 %v1443, 0.0
        %v1470 = vmax.f32 %v1446, 0.0
        %v1471 = vmax.f32 %v1451, 0.0
        %v1472 = vmax.f32 %v1454, 0.0
        %v1473 = vmax.f32 %v1457, %v1459
        %v1474 = vmax.f32 %v1458, %v1460
        %v1475 = vmax.f32 %v1473, %v1461
        %v1476 = vmax.f32 %v1474, %v1462
        %v1477 = vmax.f32 %v1475, %v1463
        %v1478 = vmax.f32 %v1476, %v1464
        %v1479 = vmax.f32 %v1477, %v1465
        %v1480 = vmax.f32 %v1478, %v1466
        %v1481 = vmax.f32 %v1479, %v1467
        %v1482 = vmax.f32 %v1480, %v1468
        %v1483 = vmax.f32 %v1481, %v1469
        %v1484 = vmax.f32 %v1482, %v1470
        %v1485 = vmax.f32 %v1483, %v1471
        %v1486 = vmax.f32 %v1484, %v1472
        %1487 = vxpose.xlu0.b32.start [1/16] %v1485, 128
        %1488 = vxpose.xlu0.b32.cont [2/16] %v1486, 128
        %1489 = vxpose.xlu0.b32.cont [3/16] 0.0, 128
        %1490 = vxpose.xlu0.b32.cont [4/16] 0.0, 128
        %1491 = vxpose.xlu0.b32.cont [5/16] 0.0, 128
        %1492 = vxpose.xlu0.b32.cont [6/16] 0.0, 128
        %1493 = vxpose.xlu0.b32.cont [7/16] 0.0, 128
        %1494 = vxpose.xlu0.b32.cont [8/16] 0.0, 128
        %1495 = vxpose.xlu0.b32.cont [9/16] 0.0, 128
        %1496 = vxpose.xlu0.b32.cont [10/16] 0.0, 128
        %1497 = vxpose.xlu0.b32.cont [11/16] 0.0, 128
        %1498 = vxpose.xlu0.b32.cont [12/16] 0.0, 128
        %1499 = vxpose.xlu0.b32.cont [13/16] 0.0, 128
        %1500 = vxpose.xlu0.b32.cont [14/16] 0.0, 128
        %1501 = vxpose.xlu0.b32.cont [15/16] 0.0, 128
        %1502 = vxpose.xlu0.b32.end [16/16] 0.0, 128
        %v1503 = vpop.trf.xlu0
        %v1504 = vpop.trf.xlu0
        %v1505 = vpop.trf.xlu0
        %v1506 = vpop.trf.xlu0
        %v1507 = vpop.trf.xlu0
        %v1508 = vpop.trf.xlu0
        %v1509 = vpop.trf.xlu0
        %v1510 = vpop.trf.xlu0
        %v1511 = vpop.trf.xlu0
        %v1512 = vpop.trf.xlu0
        %v1513 = vpop.trf.xlu0
        %v1514 = vpop.trf.xlu0
        %v1515 = vpop.trf.xlu0
        %v1516 = vpop.trf.xlu0
        %v1517 = vpop.trf.xlu0
        %v1518 = vpop.trf.xlu0
        %1519 = vst.msk [vmem:[%s362] sm:$0xff] %vm523, %v1503
        %1520 = vst.msk [vmem:[%s362 + $0x8] sm:$0xff] %vm523, %v1504
        %s1521 = sand.u32 %s234, 1
        %s1522 = scalar_lea.sflag [#allocation4], %s1521
        %s1523 = sand.u32 %s234, 1
        %s1524 = smul.addr %s1523, 16
        %s1525 = scalar_lea.vmem [#allocation3], %s1524
        // Predicated region
        $region53: #{tpu_custom_call.1} parent=51 // pred_check
          %p1526 = pneg %p244
        $region54: #{tpu_custom_call.1} parent=51 // pred_check_branch
          %1528 = sbr.rel (%p1526) target = $region56
        $region55: #{tpu_custom_call.1} parent=51 // pred_region
          %s1530 = ssub.s32 256, 256
          %1531 = vsyncadd %s1522, %s1530
          %s1532 = smul.addr %s26, 2
          %s1533 = sadd.s32 %s27, %s1532
          %s1534 = smul.addr %s1533, 128
          %s1535 = scalar_lea.hbm %s8, %s1534
          %s1536 = sshll.u32 %s1525, 4
          %s1537 = int_to_ptr.vmem [resolvable:$true] %s1536
          %1542 = dma.vmem_to_hbm [thread:$0]  %s1537, 256, %s1535, %s1522, 128, 128, 8
        $region56: #{tpu_custom_call.1} parent=51 // pred_fallthru
          _
      $region52: #{tpu_custom_call.1} parent=5 // pred_fallthru
        _
      %p1543 = scmp.le.s32.totalorder 2, %s17
      // Predicated region
      $region57: #{tpu_custom_call.1} parent=5 // pred_check
        %p1544 = pneg %p1543
      $region58: #{tpu_custom_call.1} parent=5 // pred_check_branch
        %1546 = sbr.rel (%p1544) target = $region60
      $region59: #{tpu_custom_call.1} parent=5 // pred_region
        %s1547 = ssub.s32 %s17, 2
        // Predicated region
        $region61: #{tpu_custom_call.1} parent=59 // pred_check
          %p1548 = pneg %p250
        $region62: #{tpu_custom_call.1} parent=59 // pred_check_branch
          %1550 = sbr.rel (%p1548) target = $region64
        $region63: #{tpu_custom_call.1} parent=59 // pred_region
          %s1551 = sand.u32 %s235, 1
          %s1552 = scalar_lea.sflag [#allocation4], %s1551
          %s1553 = sand.u32 %s235, 1
          %s1554 = smul.addr %s1553, 16
          %s1555 = scalar_lea.vmem [#allocation3], %s1554
          %1556 = dma.done %s1552, 256
        $region64: #{tpu_custom_call.1} parent=59 // pred_fallthru
          _
      $region60: #{tpu_custom_call.1} parent=5 // pred_fallthru
        _
    $region6: #{tpu_custom_call.1} parent=1 // loop_footer
      %s21 = sadd.s32 1, %s17
    $region7: #{tpu_custom_call.1} parent=1 // loop_footer_branch
      %16 = sbr.rel target = $region3
    $region8: #{tpu_custom_call.1} parent=1 // loop_exit
      _
    %1557 = vsyncpa [#allocation4], 1
    %s1558 = scalar_lea.sflag [#allocation4], 1
    %1559 = vsyncpa %s1558, 1

</llo_original>
